<compile_context>
chip_gen: v6e
topology: v6e:2x2x1
jax: 0.10.0
libtpu: 0.0.40
codegen_flags: <defaults>
</compile_context>

<pallas_src>
import functools

import jax
import jax.numpy as jnp
from jax import lax
from jax.experimental import pallas as pl
from jax.experimental.pallas import tpu as pltpu


def encoder_layer_kernel(x_ref, mask_ref,
                         wq_ref, bq_ref, wk_ref, bk_ref, wv_ref, bv_ref,
                         wo_ref, bo_ref,
                         g1_ref, be1_ref,
                         w1_ref, b1_ref, w2_ref, b2_ref,
                         g2_ref, be2_ref,
                         o_ref,
                         *, num_heads, eps):
    # One batch element per grid step.
    x = x_ref[0].astype(jnp.float32)        # (S, D) f32 residual path
    xb = x_ref[0].astype(jnp.bfloat16)      # bf16 copy fed to the MXU
    S, D = x.shape
    H = num_heads
    dh = D // H
    scale = jnp.float32(1.0 / (dh ** 0.5))

    def linear(vb, w_ref, b_ref):
        # bf16 x bf16 matmul, f32 accumulation, f32 bias add.
        return jnp.dot(vb, w_ref[...],
                       preferred_element_type=jnp.float32) + b_ref[...]

    def layer_norm(v, g_ref, b_ref):
        mu = jnp.mean(v, axis=-1, keepdims=True)
        var = jnp.mean((v - mu) ** 2, axis=-1, keepdims=True)
        return (v - mu) * lax.rsqrt(var + eps) * g_ref[...] + b_ref[...]

    # Additive attention bias computed ONCE per grid step (shared by all heads).
    bias = jnp.where(mask_ref[0] > 0.0, 0.0, -10000.0).astype(jnp.float32)  # (S, S)

    # ---- multi-head self-attention (head-batched, all matmuls on MXU) ----
    q = linear(xb, wq_ref, bq_ref)          # (S, D) f32
    k = linear(xb, wk_ref, bk_ref)
    v = linear(xb, wv_ref, bv_ref)

    # (S, D) -> (H, S, dh); done once, then batched matmuls (no per-head slicing).
    qh = jnp.transpose(q.reshape(S, H, dh), (1, 0, 2)).astype(jnp.bfloat16)
    kh = jnp.transpose(k.reshape(S, H, dh), (1, 0, 2)).astype(jnp.bfloat16)
    vh = jnp.transpose(v.reshape(S, H, dh), (1, 0, 2)).astype(jnp.bfloat16)

    # Batched QK^T: contraction over dh, no explicit kh.T materialization.
    scores = jnp.einsum('hqd,hkd->hqk', qh, kh,
                        preferred_element_type=jnp.float32)        # (H, S, S)
    scores = scores * scale + bias[None, :, :]

    # Softmax with un-normalized PV matmul; normalize once per row via EUP reciprocal.
    m = jnp.max(scores, axis=-1, keepdims=True)
    e = jnp.exp(scores - m)                                        # (H, S, S)
    l = jnp.sum(e, axis=-1, keepdims=True)                         # (H, S, 1)
    ctx = jnp.einsum('hqk,hkd->hqd', e.astype(jnp.bfloat16), vh,
                     preferred_element_type=jnp.float32)           # (H, S, dh)
    ctx = ctx * pl.reciprocal(l, approx=True)

    attn = jnp.transpose(ctx, (1, 0, 2)).reshape(S, D)             # (S, D) f32
    attn = linear(attn.astype(jnp.bfloat16), wo_ref, bo_ref)

    # dropout1 is identity (eval mode)
    x1 = layer_norm(attn + x, g1_ref, be1_ref)

    # ---- position-wise feed-forward ----
    hdn = jnp.maximum(linear(x1.astype(jnp.bfloat16), w1_ref, b1_ref), 0.0)  # ReLU
    ffn = linear(hdn.astype(jnp.bfloat16), w2_ref, b2_ref)

    # dropout2 is identity (eval mode)
    x2 = layer_norm(ffn + x1, g2_ref, be2_ref)

    o_ref[0] = x2.astype(o_ref.dtype)


WEIGHT_ORDER = ['wq', 'bq', 'wk', 'bk', 'wv', 'bv', 'wo', 'bo',
                'g1', 'be1', 'w1', 'b1', 'w2', 'b2', 'g2', 'be2']
# Large matrix weights are shipped to the kernel in bf16 (MXU operands, half the DMA);
# biases and LayerNorm params stay f32.
_BF16_WEIGHTS = frozenset({'wq', 'wk', 'wv', 'wo', 'w1', 'w2'})


def encoder_layer(x, src_mask, params, *, num_heads, eps=1e-12):
    B, S, D = x.shape
    weights = [params[k].astype(jnp.bfloat16) if k in _BF16_WEIGHTS else params[k]
               for k in WEIGHT_ORDER]

    def full_spec(a):
        nd = a.ndim
        return pl.BlockSpec(a.shape, lambda b, _nd=nd: (0,) * _nd)

    in_specs = ([pl.BlockSpec((1, S, D), lambda b: (b, 0, 0)),
                 pl.BlockSpec((1, S, S), lambda b: (b, 0, 0))]
                + [full_spec(w) for w in weights])

    kernel = functools.partial(encoder_layer_kernel, num_heads=num_heads, eps=eps)
    return pl.pallas_call(
        kernel,
        out_shape=jax.ShapeDtypeStruct((B, S, D), x.dtype),
        grid=(B,),
        in_specs=in_specs,
        out_specs=pl.BlockSpec((1, S, D), lambda b: (b, 0, 0)),
        compiler_params=pltpu.CompilerParams(
            dimension_semantics=("parallel",)),   # batch elements are independent
    )(x, src_mask, *weights)


def init_params(key, d_model, d_hidden):
    ks = jax.random.split(key, 8)
    s = 0.02
    return {
        'wq': s * jax.random.normal(ks[0], (d_model, d_model), jnp.float32),
        'bq': jnp.zeros((1, d_model), jnp.float32),
        'wk': s * jax.random.normal(ks[1], (d_model, d_model), jnp.float32),
        'bk': jnp.zeros((1, d_model), jnp.float32),
        'wv': s * jax.random.normal(ks[2], (d_model, d_model), jnp.float32),
        'bv': jnp.zeros((1, d_model), jnp.float32),
        'wo': s * jax.random.normal(ks[3], (d_model, d_model), jnp.float32),
        'bo': s * jax.random.normal(ks[4], (1, d_model), jnp.float32),
        'g1': jnp.ones((1, d_model), jnp.float32),
        'be1': jnp.zeros((1, d_model), jnp.float32),
        'w1': s * jax.random.normal(ks[5], (d_model, d_hidden), jnp.float32),
        'b1': s * jax.random.normal(ks[6], (1, d_hidden), jnp.float32),
        'w2': s * jax.random.normal(ks[7], (d_hidden, d_model), jnp.float32),
        'b2': jnp.zeros((1, d_model), jnp.float32),
        'g2': jnp.ones((1, d_model), jnp.float32),
        'be2': jnp.zeros((1, d_model), jnp.float32),
    }


def reference_encoder_layer(x, src_mask, params, *, num_heads, eps=1e-12):
    """Pure-JAX f32 reference with the original module semantics."""
    B, S, D = x.shape
    dh = D // num_heads

    def linear(v, w, b):
        return v @ w + b

    def ln(v, g, b):
        mu = jnp.mean(v, axis=-1, keepdims=True)
        var = jnp.mean((v - mu) ** 2, axis=-1, keepdims=True)
        return (v - mu) / jnp.sqrt(var + eps) * g + b

    q = linear(x, params['wq'], params['bq']).reshape(B, S, num_heads, dh).transpose(0, 2, 1, 3)
    k = linear(x, params['wk'], params['bk']).reshape(B, S, num_heads, dh).transpose(0, 2, 1, 3)
    v = linear(x, params['wv'], params['bv']).reshape(B, S, num_heads, dh).transpose(0, 2, 1, 3)
    scores = jnp.einsum('bhqd,bhkd->bhqk', q, k) / jnp.sqrt(jnp.float32(dh))
    scores = jnp.where(src_mask[:, None, :, :] > 0.0, scores, -10000.0)
    p = jax.nn.softmax(scores, axis=-1)
    attn = jnp.einsum('bhqk,bhkd->bhqd', p, v).transpose(0, 2, 1, 3).reshape(B, S, D)
    attn = linear(attn, params['wo'], params['bo'])
    x1 = ln(attn + x, params['g1'], params['be1'])
    hdn = jnp.maximum(linear(x1, params['w1'], params['b1']), 0.0)
    ffn = linear(hdn, params['w2'], params['b2'])
    return ln(ffn + x1, params['g2'], params['be2'])


if __name__ == "__main__":
    B, S, D, H, D_HIDDEN = 2, 8, 32, 4, 64
    key = jax.random.PRNGKey(0)
    kx, kp = jax.random.split(key)

    x = jax.random.normal(kx, (B, S, D), jnp.float32)

    # Key-padding mask: batch 0 attends to all 8 positions, batch 1 to first 6.
    lengths = jnp.array([8, 6], jnp.int32)
    key_valid = (jnp.arange(S)[None, :] < lengths[:, None]).astype(jnp.float32)  # (B, S)
    src_mask = jnp.broadcast_to(key_valid[:, None, :], (B, S, S))                 # (B, S, S)

    params = init_params(kp, D, D_HIDDEN)

    out = encoder_layer(x, src_mask, params, num_heads=H)
    out = jax.block_until_ready(out)

    ref = reference_encoder_layer(x, src_mask, params, num_heads=H)
    assert out.shape == (B, S, D)
    # bf16 MXU operands (f32 accumulation) loosen the tolerance vs. the pure-f32 reference.
    assert jnp.allclose(out, ref, atol=2e-2, rtol=2e-2), (
        "Pallas output mismatch vs JAX reference; max abs diff = "
        f"{float(jnp.max(jnp.abs(out - ref)))}")

    print("KERNEL_OK")
</pallas_src>

<mosaic_0001>
module attributes {stable_mosaic.version = 11 : i64} {
  func.func @encoder_layer_kernel(%arg0: i32, %arg1: memref<1x8x32xf32, #tpu.memory_space<vmem>>, %arg2: memref<1x8x8xf32, #tpu.memory_space<vmem>>, %arg3: memref<32x32xbf16, #tpu.memory_space<vmem>>, %arg4: memref<1x32xf32, #tpu.memory_space<vmem>>, %arg5: memref<32x32xbf16, #tpu.memory_space<vmem>>, %arg6: memref<1x32xf32, #tpu.memory_space<vmem>>, %arg7: memref<32x32xbf16, #tpu.memory_space<vmem>>, %arg8: memref<1x32xf32, #tpu.memory_space<vmem>>, %arg9: memref<32x32xbf16, #tpu.memory_space<vmem>>, %arg10: memref<1x32xf32, #tpu.memory_space<vmem>>, %arg11: memref<1x32xf32, #tpu.memory_space<vmem>>, %arg12: memref<1x32xf32, #tpu.memory_space<vmem>>, %arg13: memref<32x64xbf16, #tpu.memory_space<vmem>>, %arg14: memref<1x64xf32, #tpu.memory_space<vmem>>, %arg15: memref<64x32xbf16, #tpu.memory_space<vmem>>, %arg16: memref<1x32xf32, #tpu.memory_space<vmem>>, %arg17: memref<1x32xf32, #tpu.memory_space<vmem>>, %arg18: memref<1x32xf32, #tpu.memory_space<vmem>>, %arg19: memref<1x8x32xf32, #tpu.memory_space<vmem>>) attributes {dimension_semantics = [#tpu.dimension_semantics<parallel>], iteration_bounds = array<i64: 2>, scalar_prefetch = 0 : i64, scratch_operands = 0 : i64, tpu.core_type = #tpu.core_type<tc>, window_params = [{transform_indices = @transform_0, window_bounds = array<i64: 1, 8, 32>}, {transform_indices = @transform_1, window_bounds = array<i64: 1, 8, 8>}, {pipeline_mode = #tpu.pipeline_mode<synchronous>, transform_indices = @transform_2, window_bounds = array<i64: 32, 32>}, {pipeline_mode = #tpu.pipeline_mode<synchronous>, transform_indices = @transform_3, window_bounds = array<i64: 1, 32>}, {pipeline_mode = #tpu.pipeline_mode<synchronous>, transform_indices = @transform_4, window_bounds = array<i64: 32, 32>}, {pipeline_mode = #tpu.pipeline_mode<synchronous>, transform_indices = @transform_5, window_bounds = array<i64: 1, 32>}, {pipeline_mode = #tpu.pipeline_mode<synchronous>, transform_indices = @transform_6, window_bounds = array<i64: 32, 32>}, {pipeline_mode = #tpu.pipeline_mode<synchronous>, transform_indices = @transform_7, window_bounds = array<i64: 1, 32>}, {pipeline_mode = #tpu.pipeline_mode<synchronous>, transform_indices = @transform_8, window_bounds = array<i64: 32, 32>}, {pipeline_mode = #tpu.pipeline_mode<synchronous>, transform_indices = @transform_9, window_bounds = array<i64: 1, 32>}, {pipeline_mode = #tpu.pipeline_mode<synchronous>, transform_indices = @transform_10, window_bounds = array<i64: 1, 32>}, {pipeline_mode = #tpu.pipeline_mode<synchronous>, transform_indices = @transform_11, window_bounds = array<i64: 1, 32>}, {pipeline_mode = #tpu.pipeline_mode<synchronous>, transform_indices = @transform_12, window_bounds = array<i64: 32, 64>}, {pipeline_mode = #tpu.pipeline_mode<synchronous>, transform_indices = @transform_13, window_bounds = array<i64: 1, 64>}, {pipeline_mode = #tpu.pipeline_mode<synchronous>, transform_indices = @transform_14, window_bounds = array<i64: 64, 32>}, {pipeline_mode = #tpu.pipeline_mode<synchronous>, transform_indices = @transform_15, window_bounds = array<i64: 1, 32>}, {pipeline_mode = #tpu.pipeline_mode<synchronous>, transform_indices = @transform_16, window_bounds = array<i64: 1, 32>}, {pipeline_mode = #tpu.pipeline_mode<synchronous>, transform_indices = @transform_17, window_bounds = array<i64: 1, 32>}, {transform_indices = @transform_18, window_bounds = array<i64: 1, 8, 32>}]} {
    %c0 = arith.constant 0 : index
    %c0_0 = arith.constant 0 : index
    %c0_1 = arith.constant 0 : index
    %0 = vector.load %arg1[%c0, %c0_0, %c0_1] : memref<1x8x32xf32, #tpu.memory_space<vmem>>, vector<1x8x32xf32>
    %1 = vector.shape_cast %0 : vector<1x8x32xf32> to vector<8x32xf32>
    %c0_2 = arith.constant 0 : index
    %c0_3 = arith.constant 0 : index
    %c0_4 = arith.constant 0 : index
    %2 = vector.load %arg1[%c0_2, %c0_3, %c0_4] : memref<1x8x32xf32, #tpu.memory_space<vmem>>, vector<1x8x32xf32>
    %3 = vector.shape_cast %2 : vector<1x8x32xf32> to vector<8x32xf32>
    %4 = arith.truncf %3 : vector<8x32xf32> to vector<8x32xbf16>
    %c0_5 = arith.constant 0 : index
    %c0_6 = arith.constant 0 : index
    %c0_7 = arith.constant 0 : index
    %5 = vector.load %arg2[%c0_5, %c0_6, %c0_7] : memref<1x8x8xf32, #tpu.memory_space<vmem>>, vector<1x8x8xf32>
    %6 = vector.shape_cast %5 : vector<1x8x8xf32> to vector<8x8xf32>
    %cst = arith.constant 0.000000e+00 : f32
    %7 = vector.broadcast %cst : f32 to vector<8x8xf32>
    %8 = arith.cmpf ogt, %6, %7 : vector<8x8xf32>
    %cst_8 = arith.constant 0.000000e+00 : f32
    %cst_9 = arith.constant -1.000000e+04 : f32
    %9 = vector.broadcast %cst_8 : f32 to vector<8x8xf32>
    %10 = vector.broadcast %cst_9 : f32 to vector<8x8xf32>
    %11 = arith.select %8, %9, %10 : vector<8x8xi1>, vector<8x8xf32>
    %c0_10 = arith.constant 0 : index
    %c0_11 = arith.constant 0 : index
    %12 = vector.load %arg3[%c0_10, %c0_11] : memref<32x32xbf16, #tpu.memory_space<vmem>>, vector<32x32xbf16>
    %cst_12 = arith.constant dense<0.000000e+00> : vector<8x32xf32>
    %13 = tpu.matmul %4, %12, %cst_12 {dimension_numbers = #tpu.dot_dimension_numbers<[1], [0], [0], [1], [0, 0, 1, 1], [], []>} : vector<8x32xbf16>, vector<32x32xbf16>, vector<8x32xf32> -> vector<8x32xf32>
    %c0_13 = arith.constant 0 : index
    %c0_14 = arith.constant 0 : index
    %14 = vector.load %arg4[%c0_13, %c0_14] : memref<1x32xf32, #tpu.memory_space<vmem>>, vector<1x32xf32>
    %15 = vector.broadcast %14 : vector<1x32xf32> to vector<8x32xf32>
    %16 = arith.addf %13, %15 : vector<8x32xf32>
    %c0_15 = arith.constant 0 : index
    %c0_16 = arith.constant 0 : index
    %17 = vector.load %arg5[%c0_15, %c0_16] : memref<32x32xbf16, #tpu.memory_space<vmem>>, vector<32x32xbf16>
    %cst_17 = arith.constant dense<0.000000e+00> : vector<8x32xf32>
    %18 = tpu.matmul %4, %17, %cst_17 {dimension_numbers = #tpu.dot_dimension_numbers<[1], [0], [0], [1], [0, 0, 1, 1], [], []>} : vector<8x32xbf16>, vector<32x32xbf16>, vector<8x32xf32> -> vector<8x32xf32>
    %c0_18 = arith.constant 0 : index
    %c0_19 = arith.constant 0 : index
    %19 = vector.load %arg6[%c0_18, %c0_19] : memref<1x32xf32, #tpu.memory_space<vmem>>, vector<1x32xf32>
    %20 = vector.broadcast %19 : vector<1x32xf32> to vector<8x32xf32>
    %21 = arith.addf %18, %20 : vector<8x32xf32>
    %c0_20 = arith.constant 0 : index
    %c0_21 = arith.constant 0 : index
    %22 = vector.load %arg7[%c0_20, %c0_21] : memref<32x32xbf16, #tpu.memory_space<vmem>>, vector<32x32xbf16>
    %cst_22 = arith.constant dense<0.000000e+00> : vector<8x32xf32>
    %23 = tpu.matmul %4, %22, %cst_22 {dimension_numbers = #tpu.dot_dimension_numbers<[1], [0], [0], [1], [0, 0, 1, 1], [], []>} : vector<8x32xbf16>, vector<32x32xbf16>, vector<8x32xf32> -> vector<8x32xf32>
    %c0_23 = arith.constant 0 : index
    %c0_24 = arith.constant 0 : index
    %24 = vector.load %arg8[%c0_23, %c0_24] : memref<1x32xf32, #tpu.memory_space<vmem>>, vector<1x32xf32>
    %25 = vector.broadcast %24 : vector<1x32xf32> to vector<8x32xf32>
    %26 = arith.addf %23, %25 : vector<8x32xf32>
    %27 = vector.shape_cast %16 : vector<8x32xf32> to vector<8x4x8xf32>
    %28 = tpu.transpose %27, [1, 0, 2] : vector<8x4x8xf32> -> vector<4x8x8xf32>
    %29 = arith.truncf %28 : vector<4x8x8xf32> to vector<4x8x8xbf16>
    %30 = vector.shape_cast %21 : vector<8x32xf32> to vector<8x4x8xf32>
    %31 = tpu.transpose %30, [1, 0, 2] : vector<8x4x8xf32> -> vector<4x8x8xf32>
    %32 = arith.truncf %31 : vector<4x8x8xf32> to vector<4x8x8xbf16>
    %33 = vector.shape_cast %26 : vector<8x32xf32> to vector<8x4x8xf32>
    %34 = tpu.transpose %33, [1, 0, 2] : vector<8x4x8xf32> -> vector<4x8x8xf32>
    %35 = arith.truncf %34 : vector<4x8x8xf32> to vector<4x8x8xbf16>
    "tpu.trace_start"() <{level = 10 : i32, message = "hqd,hkd->hqk"}> : () -> ()
    %cst_25 = arith.constant dense<0.000000e+00> : vector<4x8x8xf32>
    %36 = tpu.matmul %29, %32, %cst_25 {dimension_numbers = #tpu.dot_dimension_numbers<[2], [2], [1], [1], [0, 0, 0, 1, 1, 1], [0], [0]>} : vector<4x8x8xbf16>, vector<4x8x8xbf16>, vector<4x8x8xf32> -> vector<4x8x8xf32>
    "tpu.trace_stop"() : () -> ()
    %cst_26 = arith.constant 0.353553385 : f32
    %37 = vector.broadcast %cst_26 : f32 to vector<4x8x8xf32>
    %38 = arith.mulf %36, %37 : vector<4x8x8xf32>
    %39 = vector.shape_cast %11 : vector<8x8xf32> to vector<1x8x8xf32>
    %40 = vector.broadcast %39 : vector<1x8x8xf32> to vector<4x8x8xf32>
    %41 = arith.addf %38, %40 : vector<4x8x8xf32>
    %cst_27 = arith.constant dense<0xFF800000> : vector<4x8xf32>
    %42 = vector.multi_reduction <maximumf>, %41, %cst_27 [2] : vector<4x8x8xf32> to vector<4x8xf32>
    %43 = vector.shape_cast %42 : vector<4x8xf32> to vector<4x8x1xf32>
    %44 = vector.broadcast %43 : vector<4x8x1xf32> to vector<4x8x8xf32>
    %45 = arith.subf %41, %44 : vector<4x8x8xf32>
    %46 = math.exp %45 : vector<4x8x8xf32>
    %cst_28 = arith.constant dense<0.000000e+00> : vector<4x8xf32>
    %47 = vector.multi_reduction <add>, %46, %cst_28 [2] : vector<4x8x8xf32> to vector<4x8xf32>
    %48 = vector.shape_cast %47 : vector<4x8xf32> to vector<4x8x1xf32>
    %49 = arith.truncf %46 : vector<4x8x8xf32> to vector<4x8x8xbf16>
    "tpu.trace_start"() <{level = 10 : i32, message = "hqk,hkd->hqd"}> : () -> ()
    %cst_29 = arith.constant dense<0.000000e+00> : vector<4x8x8xf32>
    %50 = tpu.matmul %49, %35, %cst_29 {dimension_numbers = #tpu.dot_dimension_numbers<[2], [1], [1], [2], [0, 0, 0, 1, 1, 2], [0], [0]>} : vector<4x8x8xbf16>, vector<4x8x8xbf16>, vector<4x8x8xf32> -> vector<4x8x8xf32>
    "tpu.trace_stop"() : () -> ()
    %51 = tpu.reciprocal %48 {approx = true} : vector<4x8x1xf32> -> vector<4x8x1xf32>
    %52 = vector.broadcast %51 : vector<4x8x1xf32> to vector<4x8x8xf32>
    %53 = arith.mulf %50, %52 : vector<4x8x8xf32>
    %54 = tpu.transpose %53, [1, 0, 2] : vector<4x8x8xf32> -> vector<8x4x8xf32>
    %55 = vector.shape_cast %54 : vector<8x4x8xf32> to vector<8x32xf32>
    %56 = arith.truncf %55 : vector<8x32xf32> to vector<8x32xbf16>
    %c0_30 = arith.constant 0 : index
    %c0_31 = arith.constant 0 : index
    %57 = vector.load %arg9[%c0_30, %c0_31] : memref<32x32xbf16, #tpu.memory_space<vmem>>, vector<32x32xbf16>
    %cst_32 = arith.constant dense<0.000000e+00> : vector<8x32xf32>
    %58 = tpu.matmul %56, %57, %cst_32 {dimension_numbers = #tpu.dot_dimension_numbers<[1], [0], [0], [1], [0, 0, 1, 1], [], []>} : vector<8x32xbf16>, vector<32x32xbf16>, vector<8x32xf32> -> vector<8x32xf32>
    %c0_33 = arith.constant 0 : index
    %c0_34 = arith.constant 0 : index
    %59 = vector.load %arg10[%c0_33, %c0_34] : memref<1x32xf32, #tpu.memory_space<vmem>>, vector<1x32xf32>
    %60 = vector.broadcast %59 : vector<1x32xf32> to vector<8x32xf32>
    %61 = arith.addf %58, %60 : vector<8x32xf32>
    %62 = arith.addf %61, %1 : vector<8x32xf32>
    %cst_35 = arith.constant dense<0.000000e+00> : vector<8xf32>
    %63 = vector.multi_reduction <add>, %62, %cst_35 [1] : vector<8x32xf32> to vector<8xf32>
    %64 = vector.shape_cast %63 : vector<8xf32> to vector<8x1xf32>
    %cst_36 = arith.constant 3.200000e+01 : f32
    %65 = vector.broadcast %cst_36 : f32 to vector<8x1xf32>
    %66 = arith.divf %64, %65 : vector<8x1xf32>
    %67 = vector.broadcast %66 : vector<8x1xf32> to vector<8x32xf32>
    %68 = arith.subf %62, %67 : vector<8x32xf32>
    %69 = arith.mulf %68, %68 : vector<8x32xf32>
    %cst_37 = arith.constant dense<0.000000e+00> : vector<8xf32>
    %70 = vector.multi_reduction <add>, %69, %cst_37 [1] : vector<8x32xf32> to vector<8xf32>
    %71 = vector.shape_cast %70 : vector<8xf32> to vector<8x1xf32>
    %cst_38 = arith.constant 3.200000e+01 : f32
    %72 = vector.broadcast %cst_38 : f32 to vector<8x1xf32>
    %73 = arith.divf %71, %72 : vector<8x1xf32>
    %74 = vector.broadcast %66 : vector<8x1xf32> to vector<8x32xf32>
    %75 = arith.subf %62, %74 : vector<8x32xf32>
    %cst_39 = arith.constant 9.99999996E-13 : f32
    %76 = vector.broadcast %cst_39 : f32 to vector<8x1xf32>
    %77 = arith.addf %73, %76 : vector<8x1xf32>
    %78 = math.rsqrt %77 : vector<8x1xf32>
    %79 = vector.broadcast %78 : vector<8x1xf32> to vector<8x32xf32>
    %80 = arith.mulf %75, %79 : vector<8x32xf32>
    %c0_40 = arith.constant 0 : index
    %c0_41 = arith.constant 0 : index
    %81 = vector.load %arg11[%c0_40, %c0_41] : memref<1x32xf32, #tpu.memory_space<vmem>>, vector<1x32xf32>
    %82 = vector.broadcast %81 : vector<1x32xf32> to vector<8x32xf32>
    %83 = arith.mulf %80, %82 : vector<8x32xf32>
    %c0_42 = arith.constant 0 : index
    %c0_43 = arith.constant 0 : index
    %84 = vector.load %arg12[%c0_42, %c0_43] : memref<1x32xf32, #tpu.memory_space<vmem>>, vector<1x32xf32>
    %85 = vector.broadcast %84 : vector<1x32xf32> to vector<8x32xf32>
    %86 = arith.addf %83, %85 : vector<8x32xf32>
    %87 = arith.truncf %86 : vector<8x32xf32> to vector<8x32xbf16>
    %c0_44 = arith.constant 0 : index
    %c0_45 = arith.constant 0 : index
    %88 = vector.load %arg13[%c0_44, %c0_45] : memref<32x64xbf16, #tpu.memory_space<vmem>>, vector<32x64xbf16>
    %cst_46 = arith.constant dense<0.000000e+00> : vector<8x64xf32>
    %89 = tpu.matmul %87, %88, %cst_46 {dimension_numbers = #tpu.dot_dimension_numbers<[1], [0], [0], [1], [0, 0, 1, 1], [], []>} : vector<8x32xbf16>, vector<32x64xbf16>, vector<8x64xf32> -> vector<8x64xf32>
    %c0_47 = arith.constant 0 : index
    %c0_48 = arith.constant 0 : index
    %90 = vector.load %arg14[%c0_47, %c0_48] : memref<1x64xf32, #tpu.memory_space<vmem>>, vector<1x64xf32>
    %91 = vector.broadcast %90 : vector<1x64xf32> to vector<8x64xf32>
    %92 = arith.addf %89, %91 : vector<8x64xf32>
    %cst_49 = arith.constant 0.000000e+00 : f32
    %93 = vector.broadcast %cst_49 : f32 to vector<8x64xf32>
    %94 = arith.maximumf %92, %93 : vector<8x64xf32>
    %95 = arith.truncf %94 : vector<8x64xf32> to vector<8x64xbf16>
    %c0_50 = arith.constant 0 : index
    %c0_51 = arith.constant 0 : index
    %96 = vector.load %arg15[%c0_50, %c0_51] : memref<64x32xbf16, #tpu.memory_space<vmem>>, vector<64x32xbf16>
    %cst_52 = arith.constant dense<0.000000e+00> : vector<8x32xf32>
    %97 = tpu.matmul %95, %96, %cst_52 {dimension_numbers = #tpu.dot_dimension_numbers<[1], [0], [0], [1], [0, 0, 1, 1], [], []>} : vector<8x64xbf16>, vector<64x32xbf16>, vector<8x32xf32> -> vector<8x32xf32>
    %c0_53 = arith.constant 0 : index
    %c0_54 = arith.constant 0 : index
    %98 = vector.load %arg16[%c0_53, %c0_54] : memref<1x32xf32, #tpu.memory_space<vmem>>, vector<1x32xf32>
    %99 = vector.broadcast %98 : vector<1x32xf32> to vector<8x32xf32>
    %100 = arith.addf %97, %99 : vector<8x32xf32>
    %101 = arith.addf %100, %86 : vector<8x32xf32>
    %cst_55 = arith.constant dense<0.000000e+00> : vector<8xf32>
    %102 = vector.multi_reduction <add>, %101, %cst_55 [1] : vector<8x32xf32> to vector<8xf32>
    %103 = vector.shape_cast %102 : vector<8xf32> to vector<8x1xf32>
    %cst_56 = arith.constant 3.200000e+01 : f32
    %104 = vector.broadcast %cst_56 : f32 to vector<8x1xf32>
    %105 = arith.divf %103, %104 : vector<8x1xf32>
    %106 = vector.broadcast %105 : vector<8x1xf32> to vector<8x32xf32>
    %107 = arith.subf %101, %106 : vector<8x32xf32>
    %108 = arith.mulf %107, %107 : vector<8x32xf32>
    %cst_57 = arith.constant dense<0.000000e+00> : vector<8xf32>
    %109 = vector.multi_reduction <add>, %108, %cst_57 [1] : vector<8x32xf32> to vector<8xf32>
    %110 = vector.shape_cast %109 : vector<8xf32> to vector<8x1xf32>
    %cst_58 = arith.constant 3.200000e+01 : f32
    %111 = vector.broadcast %cst_58 : f32 to vector<8x1xf32>
    %112 = arith.divf %110, %111 : vector<8x1xf32>
    %113 = vector.broadcast %105 : vector<8x1xf32> to vector<8x32xf32>
    %114 = arith.subf %101, %113 : vector<8x32xf32>
    %cst_59 = arith.constant 9.99999996E-13 : f32
    %115 = vector.broadcast %cst_59 : f32 to vector<8x1xf32>
    %116 = arith.addf %112, %115 : vector<8x1xf32>
    %117 = math.rsqrt %116 : vector<8x1xf32>
    %118 = vector.broadcast %117 : vector<8x1xf32> to vector<8x32xf32>
    %119 = arith.mulf %114, %118 : vector<8x32xf32>
    %c0_60 = arith.constant 0 : index
    %c0_61 = arith.constant 0 : index
    %120 = vector.load %arg17[%c0_60, %c0_61] : memref<1x32xf32, #tpu.memory_space<vmem>>, vector<1x32xf32>
    %121 = vector.broadcast %120 : vector<1x32xf32> to vector<8x32xf32>
    %122 = arith.mulf %119, %121 : vector<8x32xf32>
    %c0_62 = arith.constant 0 : index
    %c0_63 = arith.constant 0 : index
    %123 = vector.load %arg18[%c0_62, %c0_63] : memref<1x32xf32, #tpu.memory_space<vmem>>, vector<1x32xf32>
    %124 = vector.broadcast %123 : vector<1x32xf32> to vector<8x32xf32>
    %125 = arith.addf %122, %124 : vector<8x32xf32>
    %c0_64 = arith.constant 0 : index
    %c0_65 = arith.constant 0 : index
    %c0_66 = arith.constant 0 : index
    %126 = vector.load %arg19[%c0_64, %c0_65, %c0_66] : memref<1x8x32xf32, #tpu.memory_space<vmem>>, vector<1x8x32xf32>
    %127 = vector.shape_cast %126 : vector<1x8x32xf32> to vector<8x32xf32>
    %128 = vector.shape_cast %125 : vector<8x32xf32> to vector<1x8x32xf32>
    tpu.vector_store %arg19[%c0_64, %c0_65, %c0_66], %128 {strides = array<i32>} : memref<1x8x32xf32, #tpu.memory_space<vmem>>, vector<1x8x32xf32>,
    return
  }
  func.func @transform_0(%arg0: i32) -> (i32, i32, i32) {
    %c0_i32 = arith.constant 0 : i32
    %c0_i32_0 = arith.constant 0 : i32
    %c0_i32_1 = arith.constant 0 : i32
    return %arg0, %c0_i32, %c0_i32_0 : i32, i32, i32
  }
  func.func @transform_1(%arg0: i32) -> (i32, i32, i32) {
    %c0_i32 = arith.constant 0 : i32
    %c0_i32_0 = arith.constant 0 : i32
    %c0_i32_1 = arith.constant 0 : i32
    return %arg0, %c0_i32, %c0_i32_0 : i32, i32, i32
  }
  func.func @transform_2(%arg0: i32) -> (i32, i32) {
    %c0_i32 = arith.constant 0 : i32
    %c0_i32_0 = arith.constant 0 : i32
    %c0_i32_1 = arith.constant 0 : i32
    return %c0_i32, %c0_i32_0 : i32, i32
  }
  func.func @transform_3(%arg0: i32) -> (i32, i32) {
    %c0_i32 = arith.constant 0 : i32
    %c0_i32_0 = arith.constant 0 : i32
    %c0_i32_1 = arith.constant 0 : i32
    return %c0_i32, %c0_i32_0 : i32, i32
  }
  func.func @transform_4(%arg0: i32) -> (i32, i32) {
    %c0_i32 = arith.constant 0 : i32
    %c0_i32_0 = arith.constant 0 : i32
    %c0_i32_1 = arith.constant 0 : i32
    return %c0_i32, %c0_i32_0 : i32, i32
  }
  func.func @transform_5(%arg0: i32) -> (i32, i32) {
    %c0_i32 = arith.constant 0 : i32
    %c0_i32_0 = arith.constant 0 : i32
    %c0_i32_1 = arith.constant 0 : i32
    return %c0_i32, %c0_i32_0 : i32, i32
  }
  func.func @transform_6(%arg0: i32) -> (i32, i32) {
    %c0_i32 = arith.constant 0 : i32
    %c0_i32_0 = arith.constant 0 : i32
    %c0_i32_1 = arith.constant 0 : i32
    return %c0_i32, %c0_i32_0 : i32, i32
  }
  func.func @transform_7(%arg0: i32) -> (i32, i32) {
    %c0_i32 = arith.constant 0 : i32
    %c0_i32_0 = arith.constant 0 : i32
    %c0_i32_1 = arith.constant 0 : i32
    return %c0_i32, %c0_i32_0 : i32, i32
  }
  func.func @transform_8(%arg0: i32) -> (i32, i32) {
    %c0_i32 = arith.constant 0 : i32
    %c0_i32_0 = arith.constant 0 : i32
    %c0_i32_1 = arith.constant 0 : i32
    return %c0_i32, %c0_i32_0 : i32, i32
  }
  func.func @transform_9(%arg0: i32) -> (i32, i32) {
    %c0_i32 = arith.constant 0 : i32
    %c0_i32_0 = arith.constant 0 : i32
    %c0_i32_1 = arith.constant 0 : i32
    return %c0_i32, %c0_i32_0 : i32, i32
  }
  func.func @transform_10(%arg0: i32) -> (i32, i32) {
    %c0_i32 = arith.constant 0 : i32
    %c0_i32_0 = arith.constant 0 : i32
    %c0_i32_1 = arith.constant 0 : i32
    return %c0_i32, %c0_i32_0 : i32, i32
  }
  func.func @transform_11(%arg0: i32) -> (i32, i32) {
    %c0_i32 = arith.constant 0 : i32
    %c0_i32_0 = arith.constant 0 : i32
    %c0_i32_1 = arith.constant 0 : i32
    return %c0_i32, %c0_i32_0 : i32, i32
  }
  func.func @transform_12(%arg0: i32) -> (i32, i32) {
    %c0_i32 = arith.constant 0 : i32
    %c0_i32_0 = arith.constant 0 : i32
    %c0_i32_1 = arith.constant 0 : i32
    return %c0_i32, %c0_i32_0 : i32, i32
  }
  func.func @transform_13(%arg0: i32) -> (i32, i32) {
    %c0_i32 = arith.constant 0 : i32
    %c0_i32_0 = arith.constant 0 : i32
    %c0_i32_1 = arith.constant 0 : i32
    return %c0_i32, %c0_i32_0 : i32, i32
  }
  func.func @transform_14(%arg0: i32) -> (i32, i32) {
    %c0_i32 = arith.constant 0 : i32
    %c0_i32_0 = arith.constant 0 : i32
    %c0_i32_1 = arith.constant 0 : i32
    return %c0_i32, %c0_i32_0 : i32, i32
  }
  func.func @transform_15(%arg0: i32) -> (i32, i32) {
    %c0_i32 = arith.constant 0 : i32
    %c0_i32_0 = arith.constant 0 : i32
    %c0_i32_1 = arith.constant 0 : i32
    return %c0_i32, %c0_i32_0 : i32, i32
  }
  func.func @transform_16(%arg0: i32) -> (i32, i32) {
    %c0_i32 = arith.constant 0 : i32
    %c0_i32_0 = arith.constant 0 : i32
    %c0_i32_1 = arith.constant 0 : i32
    return %c0_i32, %c0_i32_0 : i32, i32
  }
  func.func @transform_17(%arg0: i32) -> (i32, i32) {
    %c0_i32 = arith.constant 0 : i32
    %c0_i32_0 = arith.constant 0 : i32
    %c0_i32_1 = arith.constant 0 : i32
    return %c0_i32, %c0_i32_0 : i32, i32
  }
  func.func @transform_18(%arg0: i32) -> (i32, i32, i32) {
    %c0_i32 = arith.constant 0 : i32
    %c0_i32_0 = arith.constant 0 : i32
    %c0_i32_1 = arith.constant 0 : i32
    return %arg0, %c0_i32, %c0_i32_0 : i32, i32, i32
  }
}

</mosaic_0001>

<llo_original>
// kernel: tpu_custom_call.1
$region0: #{tpu_custom_call.1}
  #allocation0 [shape = 'u32[]', space=smem, size = 0x4, offset = 0x4, fixed_abs, tag = 'smem constant byte address 0x4 - core index']
  #allocation1 [shape = 'u32[144,128]{1,0:T(1,128)}', space=vmem, size = 0x12000, scoped, tag = 'internal scratch']
  %s0 = inlined_call_operand.vmem [shape: f32[2,8,32], index: 0, kind: input, shape index: {}]
  %s1 = inlined_call_operand.vmem [shape: f32[2,8,8], index: 1, kind: input, shape index: {}]
  %s2 = inlined_call_operand.vmem [shape: bf16[32,32], index: 2, kind: input, shape index: {}]
  %s3 = inlined_call_operand.hbm [shape: f32[1,32], index: 3, kind: input, shape index: {}]
  %s4 = inlined_call_operand.hbm [shape: bf16[32,32], index: 4, kind: input, shape index: {}]
  %s5 = inlined_call_operand.hbm [shape: f32[1,32], index: 5, kind: input, shape index: {}]
  %s6 = inlined_call_operand.hbm [shape: bf16[32,32], index: 6, kind: input, shape index: {}]
  %s7 = inlined_call_operand.hbm [shape: f32[1,32], index: 7, kind: input, shape index: {}]
  %s8 = inlined_call_operand.hbm [shape: bf16[32,32], index: 8, kind: input, shape index: {}]
  %s9 = inlined_call_operand.hbm [shape: f32[1,32], index: 9, kind: input, shape index: {}]
  %s10 = inlined_call_operand.vmem [shape: f32[1,32], index: 10, kind: input, shape index: {}]
  %s11 = inlined_call_operand.vmem [shape: f32[1,32], index: 11, kind: input, shape index: {}]
  %s12 = inlined_call_operand.vmem [shape: bf16[32,64], index: 12, kind: input, shape index: {}]
  %s13 = inlined_call_operand.vmem [shape: f32[1,64], index: 13, kind: input, shape index: {}]
  %s14 = inlined_call_operand.vmem [shape: bf16[64,32], index: 14, kind: input, shape index: {}]
  %s15 = inlined_call_operand.vmem [shape: f32[1,32], index: 15, kind: input, shape index: {}]
  %s16 = inlined_call_operand.vmem [shape: f32[1,32], index: 16, kind: input, shape index: {}]
  %s17 = inlined_call_operand.vmem [shape: f32[1,32], index: 17, kind: input, shape index: {}]
  %s18 = inlined_call_operand.hbm [shape: f32[2,8,32], index: 18, kind: output, shape index: {}]
  %s19 = sld [smem:[#allocation0]]
  $region133: #{tpu_custom_call.1} parent=0
    _
  %s21 = ssub.s32 1, %s19
  %s22 = scalar_select 0, %s21, %s19
  $region1: #{tpu_custom_call.1} parent=0
    #allocation2 [shape = 'u8[512]{0}', space=vmem, size = 0x400, scoped, tag = 'input window, operand 3, single buffered']
    #allocation3 [shape = 's32[2]{0}', space=sflag, size = 0x8, scoped, tag = 'scoped memory for tpu_custom_call.1']
    #allocation4 [shape = 's32[2]{0}', space=sflag, size = 0x8, scoped, tag = 'scoped memory for tpu_custom_call.1']
    #allocation5 [shape = 'u8[8192]{0}', space=vmem, size = 0x2000, scoped, tag = 'input window, operand 4, single buffered']
    #allocation6 [shape = 's32[1]{0}', space=sflag, size = 0x4, scoped, tag = 'scoped memory for tpu_custom_call.1']
    #allocation7 [shape = 'u8[512]{0}', space=vmem, size = 0x400, scoped, tag = 'input window, operand 5, single buffered']
    #allocation8 [shape = 'u8[8192]{0}', space=vmem, size = 0x2000, scoped, tag = 'input window, operand 6, single buffered']
    #allocation9 [shape = 's32[1]{0}', space=sflag, size = 0x4, scoped, tag = 'scoped memory for tpu_custom_call.1']
    #allocation10 [shape = 'u8[512]{0}', space=vmem, size = 0x400, scoped, tag = 'input window, operand 7, single buffered']
    #allocation11 [shape = 'u8[8192]{0}', space=vmem, size = 0x2000, scoped, tag = 'input window, operand 8, single buffered']
    #allocation12 [shape = 's32[1]{0}', space=sflag, size = 0x4, scoped, tag = 'scoped memory for tpu_custom_call.1']
    #allocation13 [shape = 'u8[512]{0}', space=vmem, size = 0x400, scoped, tag = 'input window, operand 9, single buffered']
    #allocation14 [shape = 'u8[8192]{0}', space=vmem, size = 0x2000, scoped, tag = 'output window, operand 0']
    %23 = vsyncpa [#allocation3], 0
    %24 = vsyncpa [#allocation6], 0
    %25 = vsyncpa [#allocation9], 0
    %26 = vsyncpa [#allocation12], 0
    %27 = vsyncpa [#allocation4], 0
    %s28 = scalar_lea.sflag [#allocation4], 1
    %29 = vsyncpa %s28, 0
    loop: start=0, step=1, limit=4
    $region2: #{tpu_custom_call.1} parent=1 // loop_pre_header
      _
    $region3: #{tpu_custom_call.1} parent=1 // loop_header
      %s31 = sphi 0, %s35
      %p32 = scmp.ge.s32.totalorder %s31, 4
      %s41 = sphi 0, %s43
      %s44 = sphi 0, %s41
      %s45 = sphi 0, %s44
      %s61 = sphi 0, %s45
      %s67 = sphi 0, %s69
      %s70 = sphi 0, %s67
      %s71 = sphi 0, %s70
      %s87 = sphi 0, %s71
      %s91 = sphi 0, %s91
      %s93 = sphi 0, %s91
      %s94 = sphi 0, %s93
      %s108 = sphi 0, %s94
      %s112 = sphi 0, %s112
      %s114 = sphi 0, %s112
      %s115 = sphi 0, %s114
      %s129 = sphi 0, %s115
      %s133 = sphi 0, %s133
      %s135 = sphi 0, %s133
      %s136 = sphi 0, %s135
      %s150 = sphi 0, %s136
      %s154 = sphi 0, %s154
      %s156 = sphi 0, %s154
      %s157 = sphi 0, %s156
      %s171 = sphi 0, %s157
      %s175 = sphi 0, %s175
      %s177 = sphi 0, %s175
      %s178 = sphi 0, %s177
      %s192 = sphi 0, %s178
      %s196 = sphi 0, %s196
      %s198 = sphi 0, %s196
      %s199 = sphi 0, %s198
      %s213 = sphi 0, %s199
      %s217 = sphi 0, %s217
      %s219 = sphi 0, %s217
      %s220 = sphi 0, %s219
      %s234 = sphi 0, %s220
      %s238 = sphi 0, %s238
      %s240 = sphi 0, %s238
      %s241 = sphi 0, %s240
      %s255 = sphi 0, %s241
      %s259 = sphi 0, %s259
      %s261 = sphi 0, %s259
      %s262 = sphi 0, %s261
      %s276 = sphi 0, %s262
      %s280 = sphi 0, %s280
      %s282 = sphi 0, %s280
      %s283 = sphi 0, %s282
      %s297 = sphi 0, %s283
      %s301 = sphi 0, %s301
      %s303 = sphi 0, %s301
      %s304 = sphi 0, %s303
      %s318 = sphi 0, %s304
      %s322 = sphi 0, %s322
      %s324 = sphi 0, %s322
      %s325 = sphi 0, %s324
      %s339 = sphi 0, %s325
      %s343 = sphi 0, %s343
      %s345 = sphi 0, %s343
      %s346 = sphi 0, %s345
      %s360 = sphi 0, %s346
      %s364 = sphi 0, %s364
      %s366 = sphi 0, %s364
      %s367 = sphi 0, %s366
      %s381 = sphi 0, %s367
      %s385 = sphi 0, %s385
      %s387 = sphi 0, %s385
      %s388 = sphi 0, %s387
      %s402 = sphi 0, %s388
      %s406 = sphi 0, %s406
      %s408 = sphi 0, %s406
      %s409 = sphi 0, %s408
      %s423 = sphi 0, %s409
      %s429 = sphi 0, %s431
      %s432 = sphi 0, %s429
      %s433 = sphi 0, %s432
      %s449 = sphi 0, %s433
    $region4: #{tpu_custom_call.1} parent=1 // loop_header_branch
      %34 = sbr.rel (%p32) target = $region8
    $region5: #{tpu_custom_call.1} parent=1 // loop_body
      %s36 = ssub.s32 %s31, 1
      %s37 = ssub.s32 %s31, 2
      %s38 = sadd.s32 %s31, 1
      %s39 = ssub.s32 %s31, %s38
      %p40 = scmp.eq.s32.totalorder %s39, 0
      %s42 = sadd.s32 %s41, 1
      %s43 = scalar_select %p40, %s41, %s42
      %p46 = pneg %p40
      %p47 = scmp.eq.s32.totalorder %s31, 1
      %p48 = por %p46, %p47
      %p49 = scmp.ne.s32.totalorder %s41, %s44
      %p50 = scmp.eq.s32.totalorder %s31, 0
      %p51 = por %p49, %p50
      %p52 = scmp.ne.s32.totalorder %s41, %s44
      %p53 = scmp.eq.s32.totalorder %s36, 1
      %p54 = por %p52, %p53
      %p55 = scmp.ne.s32.totalorder %s44, %s45
      %p56 = scmp.eq.s32.totalorder %s36, 0
      %p57 = por %p55, %p56
      %p58 = scmp.ne.s32.totalorder %s44, %s45
      %p59 = scmp.eq.s32.totalorder %s37, 1
      %p60 = por %p58, %p59
      %p62 = scmp.ne.s32.totalorder %s45, %s61
      %p63 = scmp.eq.s32.totalorder %s37, 0
      %p64 = por %p62, %p63
      %s65 = ssub.s32 %s31, %s38
      %p66 = scmp.eq.s32.totalorder %s65, 0
      %s68 = sadd.s32 %s67, 1
      %s69 = scalar_select %p66, %s67, %s68
      %p72 = pneg %p66
      %p73 = scmp.eq.s32.totalorder %s31, 1
      %p74 = por %p72, %p73
      %p75 = scmp.ne.s32.totalorder %s67, %s70
      %p76 = scmp.eq.s32.totalorder %s31, 0
      %p77 = por %p75, %p76
      %p78 = scmp.ne.s32.totalorder %s67, %s70
      %p79 = scmp.eq.s32.totalorder %s36, 1
      %p80 = por %p78, %p79
      %p81 = scmp.ne.s32.totalorder %s70, %s71
      %p82 = scmp.eq.s32.totalorder %s36, 0
      %p83 = por %p81, %p82
      %p84 = scmp.ne.s32.totalorder %s70, %s71
      %p85 = scmp.eq.s32.totalorder %s37, 1
      %p86 = por %p84, %p85
      %p88 = scmp.ne.s32.totalorder %s71, %s87
      %p89 = scmp.eq.s32.totalorder %s37, 0
      %p90 = por %p88, %p89
      %s92 = sadd.s32 %s91, 1
      %p95 = scmp.eq.s32.totalorder %s31, 1
      %p96 = scmp.ne.s32.totalorder %s91, %s93
      %p97 = scmp.eq.s32.totalorder %s31, 0
      %p98 = por %p96, %p97
      %p99 = scmp.ne.s32.totalorder %s91, %s93
      %p100 = scmp.eq.s32.totalorder %s36, 1
      %p101 = por %p99, %p100
      %p102 = scmp.ne.s32.totalorder %s93, %s94
      %p103 = scmp.eq.s32.totalorder %s36, 0
      %p104 = por %p102, %p103
      %p105 = scmp.ne.s32.totalorder %s93, %s94
      %p106 = scmp.eq.s32.totalorder %s37, 1
      %p107 = por %p105, %p106
      %p109 = scmp.ne.s32.totalorder %s94, %s108
      %p110 = scmp.eq.s32.totalorder %s37, 0
      %p111 = por %p109, %p110
      %s113 = sadd.s32 %s112, 1
      %p116 = scmp.eq.s32.totalorder %s31, 1
      %p117 = scmp.ne.s32.totalorder %s112, %s114
      %p118 = scmp.eq.s32.totalorder %s31, 0
      %p119 = por %p117, %p118
      %p120 = scmp.ne.s32.totalorder %s112, %s114
      %p121 = scmp.eq.s32.totalorder %s36, 1
      %p122 = por %p120, %p121
      %p123 = scmp.ne.s32.totalorder %s114, %s115
      %p124 = scmp.eq.s32.totalorder %s36, 0
      %p125 = por %p123, %p124
      %p126 = scmp.ne.s32.totalorder %s114, %s115
      %p127 = scmp.eq.s32.totalorder %s37, 1
      %p128 = por %p126, %p127
      %p130 = scmp.ne.s32.totalorder %s115, %s129
      %p131 = scmp.eq.s32.totalorder %s37, 0
      %p132 = por %p130, %p131
      %s134 = sadd.s32 %s133, 1
      %p137 = scmp.eq.s32.totalorder %s31, 1
      %p138 = scmp.ne.s32.totalorder %s133, %s135
      %p139 = scmp.eq.s32.totalorder %s31, 0
      %p140 = por %p138, %p139
      %p141 = scmp.ne.s32.totalorder %s133, %s135
      %p142 = scmp.eq.s32.totalorder %s36, 1
      %p143 = por %p141, %p142
      %p144 = scmp.ne.s32.totalorder %s135, %s136
      %p145 = scmp.eq.s32.totalorder %s36, 0
      %p146 = por %p144, %p145
      %p147 = scmp.ne.s32.totalorder %s135, %s136
      %p148 = scmp.eq.s32.totalorder %s37, 1
      %p149 = por %p147, %p148
      %p151 = scmp.ne.s32.totalorder %s136, %s150
      %p152 = scmp.eq.s32.totalorder %s37, 0
      %p153 = por %p151, %p152
      %s155 = sadd.s32 %s154, 1
      %p158 = scmp.eq.s32.totalorder %s31, 1
      %p159 = scmp.ne.s32.totalorder %s154, %s156
      %p160 = scmp.eq.s32.totalorder %s31, 0
      %p161 = por %p159, %p160
      %p162 = scmp.ne.s32.totalorder %s154, %s156
      %p163 = scmp.eq.s32.totalorder %s36, 1
      %p164 = por %p162, %p163
      %p165 = scmp.ne.s32.totalorder %s156, %s157
      %p166 = scmp.eq.s32.totalorder %s36, 0
      %p167 = por %p165, %p166
      %p168 = scmp.ne.s32.totalorder %s156, %s157
      %p169 = scmp.eq.s32.totalorder %s37, 1
      %p170 = por %p168, %p169
      %p172 = scmp.ne.s32.totalorder %s157, %s171
      %p173 = scmp.eq.s32.totalorder %s37, 0
      %p174 = por %p172, %p173
      %s176 = sadd.s32 %s175, 1
      %p179 = scmp.eq.s32.totalorder %s31, 1
      %p180 = scmp.ne.s32.totalorder %s175, %s177
      %p181 = scmp.eq.s32.totalorder %s31, 0
      %p182 = por %p180, %p181
      %p183 = scmp.ne.s32.totalorder %s175, %s177
      %p184 = scmp.eq.s32.totalorder %s36, 1
      %p185 = por %p183, %p184
      %p186 = scmp.ne.s32.totalorder %s177, %s178
      %p187 = scmp.eq.s32.totalorder %s36, 0
      %p188 = por %p186, %p187
      %p189 = scmp.ne.s32.totalorder %s177, %s178
      %p190 = scmp.eq.s32.totalorder %s37, 1
      %p191 = por %p189, %p190
      %p193 = scmp.ne.s32.totalorder %s178, %s192
      %p194 = scmp.eq.s32.totalorder %s37, 0
      %p195 = por %p193, %p194
      %s197 = sadd.s32 %s196, 1
      %p200 = scmp.eq.s32.totalorder %s31, 1
      %p201 = scmp.ne.s32.totalorder %s196, %s198
      %p202 = scmp.eq.s32.totalorder %s31, 0
      %p203 = por %p201, %p202
      %p204 = scmp.ne.s32.totalorder %s196, %s198
      %p205 = scmp.eq.s32.totalorder %s36, 1
      %p206 = por %p204, %p205
      %p207 = scmp.ne.s32.totalorder %s198, %s199
      %p208 = scmp.eq.s32.totalorder %s36, 0
      %p209 = por %p207, %p208
      %p210 = scmp.ne.s32.totalorder %s198, %s199
      %p211 = scmp.eq.s32.totalorder %s37, 1
      %p212 = por %p210, %p211
      %p214 = scmp.ne.s32.totalorder %s199, %s213
      %p215 = scmp.eq.s32.totalorder %s37, 0
      %p216 = por %p214, %p215
      %s218 = sadd.s32 %s217, 1
      %p221 = scmp.eq.s32.totalorder %s31, 1
      %p222 = scmp.ne.s32.totalorder %s217, %s219
      %p223 = scmp.eq.s32.totalorder %s31, 0
      %p224 = por %p222, %p223
      %p225 = scmp.ne.s32.totalorder %s217, %s219
      %p226 = scmp.eq.s32.totalorder %s36, 1
      %p227 = por %p225, %p226
      %p228 = scmp.ne.s32.totalorder %s219, %s220
      %p229 = scmp.eq.s32.totalorder %s36, 0
      %p230 = por %p228, %p229
      %p231 = scmp.ne.s32.totalorder %s219, %s220
      %p232 = scmp.eq.s32.totalorder %s37, 1
      %p233 = por %p231, %p232
      %p235 = scmp.ne.s32.totalorder %s220, %s234
      %p236 = scmp.eq.s32.totalorder %s37, 0
      %p237 = por %p235, %p236
      %s239 = sadd.s32 %s238, 1
      %p242 = scmp.eq.s32.totalorder %s31, 1
      %p243 = scmp.ne.s32.totalorder %s238, %s240
      %p244 = scmp.eq.s32.totalorder %s31, 0
      %p245 = por %p243, %p244
      %p246 = scmp.ne.s32.totalorder %s238, %s240
      %p247 = scmp.eq.s32.totalorder %s36, 1
      %p248 = por %p246, %p247
      %p249 = scmp.ne.s32.totalorder %s240, %s241
      %p250 = scmp.eq.s32.totalorder %s36, 0
      %p251 = por %p249, %p250
      %p252 = scmp.ne.s32.totalorder %s240, %s241
      %p253 = scmp.eq.s32.totalorder %s37, 1
      %p254 = por %p252, %p253
      %p256 = scmp.ne.s32.totalorder %s241, %s255
      %p257 = scmp.eq.s32.totalorder %s37, 0
      %p258 = por %p256, %p257
      %s260 = sadd.s32 %s259, 1
      %p263 = scmp.eq.s32.totalorder %s31, 1
      %p264 = scmp.ne.s32.totalorder %s259, %s261
      %p265 = scmp.eq.s32.totalorder %s31, 0
      %p266 = por %p264, %p265
      %p267 = scmp.ne.s32.totalorder %s259, %s261
      %p268 = scmp.eq.s32.totalorder %s36, 1
      %p269 = por %p267, %p268
      %p270 = scmp.ne.s32.totalorder %s261, %s262
      %p271 = scmp.eq.s32.totalorder %s36, 0
      %p272 = por %p270, %p271
      %p273 = scmp.ne.s32.totalorder %s261, %s262
      %p274 = scmp.eq.s32.totalorder %s37, 1
      %p275 = por %p273, %p274
      %p277 = scmp.ne.s32.totalorder %s262, %s276
      %p278 = scmp.eq.s32.totalorder %s37, 0
      %p279 = por %p277, %p278
      %s281 = sadd.s32 %s280, 1
      %p284 = scmp.eq.s32.totalorder %s31, 1
      %p285 = scmp.ne.s32.totalorder %s280, %s282
      %p286 = scmp.eq.s32.totalorder %s31, 0
      %p287 = por %p285, %p286
      %p288 = scmp.ne.s32.totalorder %s280, %s282
      %p289 = scmp.eq.s32.totalorder %s36, 1
      %p290 = por %p288, %p289
      %p291 = scmp.ne.s32.totalorder %s282, %s283
      %p292 = scmp.eq.s32.totalorder %s36, 0
      %p293 = por %p291, %p292
      %p294 = scmp.ne.s32.totalorder %s282, %s283
      %p295 = scmp.eq.s32.totalorder %s37, 1
      %p296 = por %p294, %p295
      %p298 = scmp.ne.s32.totalorder %s283, %s297
      %p299 = scmp.eq.s32.totalorder %s37, 0
      %p300 = por %p298, %p299
      %s302 = sadd.s32 %s301, 1
      %p305 = scmp.eq.s32.totalorder %s31, 1
      %p306 = scmp.ne.s32.totalorder %s301, %s303
      %p307 = scmp.eq.s32.totalorder %s31, 0
      %p308 = por %p306, %p307
      %p309 = scmp.ne.s32.totalorder %s301, %s303
      %p310 = scmp.eq.s32.totalorder %s36, 1
      %p311 = por %p309, %p310
      %p312 = scmp.ne.s32.totalorder %s303, %s304
      %p313 = scmp.eq.s32.totalorder %s36, 0
      %p314 = por %p312, %p313
      %p315 = scmp.ne.s32.totalorder %s303, %s304
      %p316 = scmp.eq.s32.totalorder %s37, 1
      %p317 = por %p315, %p316
      %p319 = scmp.ne.s32.totalorder %s304, %s318
      %p320 = scmp.eq.s32.totalorder %s37, 0
      %p321 = por %p319, %p320
      %s323 = sadd.s32 %s322, 1
      %p326 = scmp.eq.s32.totalorder %s31, 1
      %p327 = scmp.ne.s32.totalorder %s322, %s324
      %p328 = scmp.eq.s32.totalorder %s31, 0
      %p329 = por %p327, %p328
      %p330 = scmp.ne.s32.totalorder %s322, %s324
      %p331 = scmp.eq.s32.totalorder %s36, 1
      %p332 = por %p330, %p331
      %p333 = scmp.ne.s32.totalorder %s324, %s325
      %p334 = scmp.eq.s32.totalorder %s36, 0
      %p335 = por %p333, %p334
      %p336 = scmp.ne.s32.totalorder %s324, %s325
      %p337 = scmp.eq.s32.totalorder %s37, 1
      %p338 = por %p336, %p337
      %p340 = scmp.ne.s32.totalorder %s325, %s339
      %p341 = scmp.eq.s32.totalorder %s37, 0
      %p342 = por %p340, %p341
      %s344 = sadd.s32 %s343, 1
      %p347 = scmp.eq.s32.totalorder %s31, 1
      %p348 = scmp.ne.s32.totalorder %s343, %s345
      %p349 = scmp.eq.s32.totalorder %s31, 0
      %p350 = por %p348, %p349
      %p351 = scmp.ne.s32.totalorder %s343, %s345
      %p352 = scmp.eq.s32.totalorder %s36, 1
      %p353 = por %p351, %p352
      %p354 = scmp.ne.s32.totalorder %s345, %s346
      %p355 = scmp.eq.s32.totalorder %s36, 0
      %p356 = por %p354, %p355
      %p357 = scmp.ne.s32.totalorder %s345, %s346
      %p358 = scmp.eq.s32.totalorder %s37, 1
      %p359 = por %p357, %p358
      %p361 = scmp.ne.s32.totalorder %s346, %s360
      %p362 = scmp.eq.s32.totalorder %s37, 0
      %p363 = por %p361, %p362
      %s365 = sadd.s32 %s364, 1
      %p368 = scmp.eq.s32.totalorder %s31, 1
      %p369 = scmp.ne.s32.totalorder %s364, %s366
      %p370 = scmp.eq.s32.totalorder %s31, 0
      %p371 = por %p369, %p370
      %p372 = scmp.ne.s32.totalorder %s364, %s366
      %p373 = scmp.eq.s32.totalorder %s36, 1
      %p374 = por %p372, %p373
      %p375 = scmp.ne.s32.totalorder %s366, %s367
      %p376 = scmp.eq.s32.totalorder %s36, 0
      %p377 = por %p375, %p376
      %p378 = scmp.ne.s32.totalorder %s366, %s367
      %p379 = scmp.eq.s32.totalorder %s37, 1
      %p380 = por %p378, %p379
      %p382 = scmp.ne.s32.totalorder %s367, %s381
      %p383 = scmp.eq.s32.totalorder %s37, 0
      %p384 = por %p382, %p383
      %s386 = sadd.s32 %s385, 1
      %p389 = scmp.eq.s32.totalorder %s31, 1
      %p390 = scmp.ne.s32.totalorder %s385, %s387
      %p391 = scmp.eq.s32.totalorder %s31, 0
      %p392 = por %p390, %p391
      %p393 = scmp.ne.s32.totalorder %s385, %s387
      %p394 = scmp.eq.s32.totalorder %s36, 1
      %p395 = por %p393, %p394
      %p396 = scmp.ne.s32.totalorder %s387, %s388
      %p397 = scmp.eq.s32.totalorder %s36, 0
      %p398 = por %p396, %p397
      %p399 = scmp.ne.s32.totalorder %s387, %s388
      %p400 = scmp.eq.s32.totalorder %s37, 1
      %p401 = por %p399, %p400
      %p403 = scmp.ne.s32.totalorder %s388, %s402
      %p404 = scmp.eq.s32.totalorder %s37, 0
      %p405 = por %p403, %p404
      %s407 = sadd.s32 %s406, 1
      %p410 = scmp.eq.s32.totalorder %s31, 1
      %p411 = scmp.ne.s32.totalorder %s406, %s408
      %p412 = scmp.eq.s32.totalorder %s31, 0
      %p413 = por %p411, %p412
      %p414 = scmp.ne.s32.totalorder %s406, %s408
      %p415 = scmp.eq.s32.totalorder %s36, 1
      %p416 = por %p414, %p415
      %p417 = scmp.ne.s32.totalorder %s408, %s409
      %p418 = scmp.eq.s32.totalorder %s36, 0
      %p419 = por %p417, %p418
      %p420 = scmp.ne.s32.totalorder %s408, %s409
      %p421 = scmp.eq.s32.totalorder %s37, 1
      %p422 = por %p420, %p421
      %p424 = scmp.ne.s32.totalorder %s409, %s423
      %p425 = scmp.eq.s32.totalorder %s37, 0
      %p426 = por %p424, %p425
      %s427 = ssub.s32 %s31, %s38
      %p428 = scmp.eq.s32.totalorder %s427, 0
      %s430 = sadd.s32 %s429, 1
      %s431 = scalar_select %p428, %s429, %s430
      %p434 = pneg %p428
      %p435 = scmp.eq.s32.totalorder %s31, 1
      %p436 = por %p434, %p435
      %p437 = scmp.ne.s32.totalorder %s429, %s432
      %p438 = scmp.eq.s32.totalorder %s31, 0
      %p439 = por %p437, %p438
      %p440 = scmp.ne.s32.totalorder %s429, %s432
      %p441 = scmp.eq.s32.totalorder %s36, 1
      %p442 = por %p440, %p441
      %p443 = scmp.ne.s32.totalorder %s432, %s433
      %p444 = scmp.eq.s32.totalorder %s36, 0
      %p445 = por %p443, %p444
      %p446 = scmp.ne.s32.totalorder %s432, %s433
      %p447 = scmp.eq.s32.totalorder %s37, 1
      %p448 = por %p446, %p447
      %p450 = scmp.ne.s32.totalorder %s433, %s449
      %p451 = scmp.eq.s32.totalorder %s37, 0
      %p452 = por %p450, %p451
      %p453 = scmp.le.s32.totalorder 1, %s31
      %p454 = scmp.lt.s32.totalorder %s31, 3
      %p455 = pnand %p453, %p454
      %p456 = pneg %p455
      // Predicated region
      $region9: #{tpu_custom_call.1} parent=5 // pred_check
        _
      $region10: #{tpu_custom_call.1} parent=5 // pred_check_branch
        %458 = sbr.rel (%p455) target = $region12
      $region11: #{tpu_custom_call.1} parent=5 // pred_region
        %s459 = ssub.s32 %s31, 1
        // Predicated region
        $region13: #{tpu_custom_call.1} parent=11 // pred_check
          %p460 = pneg %p104
        $region14: #{tpu_custom_call.1} parent=11 // pred_check_branch
          %462 = sbr.rel (%p460) target = $region16
        $region15: #{tpu_custom_call.1} parent=11 // pred_region
          _
        $region16: #{tpu_custom_call.1} parent=11 // pred_fallthru
          _
        // Predicated region
        $region17: #{tpu_custom_call.1} parent=11 // pred_check
          %p463 = pneg %p125
        $region18: #{tpu_custom_call.1} parent=11 // pred_check_branch
          %465 = sbr.rel (%p463) target = $region20
        $region19: #{tpu_custom_call.1} parent=11 // pred_region
          %s467 = ssub.s32 16, 16
          %468 = vsyncadd [#allocation3], %s467
          %s470 = sshll.u32 [#allocation2], 4
          %s471 = int_to_ptr.vmem [resolvable:$true] %s470
          %473 = dma.hbm_to_vmem [thread:$0]  %s3, 16, %s471, [#allocation3]
        $region20: #{tpu_custom_call.1} parent=11 // pred_fallthru
          _
        // Predicated region
        $region21: #{tpu_custom_call.1} parent=11 // pred_check
          %p474 = pneg %p146
        $region22: #{tpu_custom_call.1} parent=11 // pred_check_branch
          %476 = sbr.rel (%p474) target = $region24
        $region23: #{tpu_custom_call.1} parent=11 // pred_region
          %s478 = ssub.s32 256, 256
          %479 = vsyncadd [#allocation6], %s478
          %s480 = sshll.u32 [#allocation5], 4
          %s481 = int_to_ptr.vmem [resolvable:$true] %s480
          %486 = dma.hbm_to_vmem [thread:$0]  %s4, 256, %s481, [#allocation6], 64, 64, 4
        $region24: #{tpu_custom_call.1} parent=11 // pred_fallthru
          _
        // Predicated region
        $region25: #{tpu_custom_call.1} parent=11 // pred_check
          %p487 = pneg %p167
        $region26: #{tpu_custom_call.1} parent=11 // pred_check_branch
          %489 = sbr.rel (%p487) target = $region28
        $region27: #{tpu_custom_call.1} parent=11 // pred_region
          %s491 = ssub.s32 16, 16
          %492 = vsyncadd [#allocation6], %s491
          %s494 = sshll.u32 [#allocation7], 4
          %s495 = int_to_ptr.vmem [resolvable:$true] %s494
          %497 = dma.hbm_to_vmem [thread:$0]  %s5, 16, %s495, [#allocation6]
        $region28: #{tpu_custom_call.1} parent=11 // pred_fallthru
          _
        // Predicated region
        $region29: #{tpu_custom_call.1} parent=11 // pred_check
          %p498 = pneg %p188
        $region30: #{tpu_custom_call.1} parent=11 // pred_check_branch
          %500 = sbr.rel (%p498) target = $region32
        $region31: #{tpu_custom_call.1} parent=11 // pred_region
          %s502 = ssub.s32 256, 256
          %503 = vsyncadd [#allocation9], %s502
          %s504 = sshll.u32 [#allocation8], 4
          %s505 = int_to_ptr.vmem [resolvable:$true] %s504
          %510 = dma.hbm_to_vmem [thread:$0]  %s6, 256, %s505, [#allocation9], 64, 64, 4
        $region32: #{tpu_custom_call.1} parent=11 // pred_fallthru
          _
        // Predicated region
        $region33: #{tpu_custom_call.1} parent=11 // pred_check
          %p511 = pneg %p209
        $region34: #{tpu_custom_call.1} parent=11 // pred_check_branch
          %513 = sbr.rel (%p511) target = $region36
        $region35: #{tpu_custom_call.1} parent=11 // pred_region
          %s515 = ssub.s32 16, 16
          %516 = vsyncadd [#allocation9], %s515
          %s518 = sshll.u32 [#allocation10], 4
          %s519 = int_to_ptr.vmem [resolvable:$true] %s518
          %521 = dma.hbm_to_vmem [thread:$0]  %s7, 16, %s519, [#allocation9]
        $region36: #{tpu_custom_call.1} parent=11 // pred_fallthru
          _
        // Predicated region
        $region37: #{tpu_custom_call.1} parent=11 // pred_check
          %p522 = pneg %p230
        $region38: #{tpu_custom_call.1} parent=11 // pred_check_branch
          %524 = sbr.rel (%p522) target = $region40
        $region39: #{tpu_custom_call.1} parent=11 // pred_region
          %s526 = ssub.s32 256, 256
          %527 = vsyncadd [#allocation12], %s526
          %s528 = sshll.u32 [#allocation11], 4
          %s529 = int_to_ptr.vmem [resolvable:$true] %s528
          %534 = dma.hbm_to_vmem [thread:$0]  %s8, 256, %s529, [#allocation12], 64, 64, 4
        $region40: #{tpu_custom_call.1} parent=11 // pred_fallthru
          _
        // Predicated region
        $region41: #{tpu_custom_call.1} parent=11 // pred_check
          %p535 = pneg %p251
        $region42: #{tpu_custom_call.1} parent=11 // pred_check_branch
          %537 = sbr.rel (%p535) target = $region44
        $region43: #{tpu_custom_call.1} parent=11 // pred_region
          %s539 = ssub.s32 16, 16
          %540 = vsyncadd [#allocation12], %s539
          %s542 = sshll.u32 [#allocation13], 4
          %s543 = int_to_ptr.vmem [resolvable:$true] %s542
          %545 = dma.hbm_to_vmem [thread:$0]  %s9, 16, %s543, [#allocation12]
        $region44: #{tpu_custom_call.1} parent=11 // pred_fallthru
          _
        // Predicated region
        $region45: #{tpu_custom_call.1} parent=11 // pred_check
          %p546 = pneg %p272
        $region46: #{tpu_custom_call.1} parent=11 // pred_check_branch
          %548 = sbr.rel (%p546) target = $region48
        $region47: #{tpu_custom_call.1} parent=11 // pred_region
          _
        $region48: #{tpu_custom_call.1} parent=11 // pred_fallthru
          _
        // Predicated region
        $region49: #{tpu_custom_call.1} parent=11 // pred_check
          %p549 = pneg %p293
        $region50: #{tpu_custom_call.1} parent=11 // pred_check_branch
          %551 = sbr.rel (%p549) target = $region52
        $region51: #{tpu_custom_call.1} parent=11 // pred_region
          _
        $region52: #{tpu_custom_call.1} parent=11 // pred_fallthru
          _
        // Predicated region
        $region53: #{tpu_custom_call.1} parent=11 // pred_check
          %p552 = pneg %p314
        $region54: #{tpu_custom_call.1} parent=11 // pred_check_branch
          %554 = sbr.rel (%p552) target = $region56
        $region55: #{tpu_custom_call.1} parent=11 // pred_region
          _
        $region56: #{tpu_custom_call.1} parent=11 // pred_fallthru
          _
        // Predicated region
        $region57: #{tpu_custom_call.1} parent=11 // pred_check
          %p555 = pneg %p335
        $region58: #{tpu_custom_call.1} parent=11 // pred_check_branch
          %557 = sbr.rel (%p555) target = $region60
        $region59: #{tpu_custom_call.1} parent=11 // pred_region
          _
        $region60: #{tpu_custom_call.1} parent=11 // pred_fallthru
          _
        // Predicated region
        $region61: #{tpu_custom_call.1} parent=11 // pred_check
          %p558 = pneg %p356
        $region62: #{tpu_custom_call.1} parent=11 // pred_check_branch
          %560 = sbr.rel (%p558) target = $region64
        $region63: #{tpu_custom_call.1} parent=11 // pred_region
          _
        $region64: #{tpu_custom_call.1} parent=11 // pred_fallthru
          _
        // Predicated region
        $region65: #{tpu_custom_call.1} parent=11 // pred_check
          %p561 = pneg %p377
        $region66: #{tpu_custom_call.1} parent=11 // pred_check_branch
          %563 = sbr.rel (%p561) target = $region68
        $region67: #{tpu_custom_call.1} parent=11 // pred_region
          _
        $region68: #{tpu_custom_call.1} parent=11 // pred_fallthru
          _
        // Predicated region
        $region69: #{tpu_custom_call.1} parent=11 // pred_check
          %p564 = pneg %p398
        $region70: #{tpu_custom_call.1} parent=11 // pred_check_branch
          %566 = sbr.rel (%p564) target = $region72
        $region71: #{tpu_custom_call.1} parent=11 // pred_region
          _
        $region72: #{tpu_custom_call.1} parent=11 // pred_fallthru
          _
        // Predicated region
        $region73: #{tpu_custom_call.1} parent=11 // pred_check
          %p567 = pneg %p419
        $region74: #{tpu_custom_call.1} parent=11 // pred_check_branch
          %569 = sbr.rel (%p567) target = $region76
        $region75: #{tpu_custom_call.1} parent=11 // pred_region
          _
        $region76: #{tpu_custom_call.1} parent=11 // pred_fallthru
          _
      $region12: #{tpu_custom_call.1} parent=5 // pred_fallthru
        _
      %p570 = scmp.lt.s32.totalorder %s31, 2
      // Predicated region
      $region77: #{tpu_custom_call.1} parent=5 // pred_check
        %p571 = pneg %p570
      $region78: #{tpu_custom_call.1} parent=5 // pred_check_branch
        %573 = sbr.rel (%p571) target = $region80
      $region79: #{tpu_custom_call.1} parent=5 // pred_region
        // Predicated region
        $region81: #{tpu_custom_call.1} parent=79 // pred_check
          %p574 = pneg %p51
        $region82: #{tpu_custom_call.1} parent=79 // pred_check_branch
          %576 = sbr.rel (%p574) target = $region84
        $region83: #{tpu_custom_call.1} parent=79 // pred_region
          %p577 = scmp.lt.s32.totalorder %s31, 1
          %s578 = scalar_select %p577, %s31, 1
          %s579 = smul.addr %s578, 8
          %s580 = scalar_lea.vmem %s0, %s579
        $region84: #{tpu_custom_call.1} parent=79 // pred_fallthru
          _
        // Predicated region
        $region85: #{tpu_custom_call.1} parent=79 // pred_check
          %p581 = pneg %p77
        $region86: #{tpu_custom_call.1} parent=79 // pred_check_branch
          %583 = sbr.rel (%p581) target = $region88
        $region87: #{tpu_custom_call.1} parent=79 // pred_region
          %p584 = scmp.lt.s32.totalorder %s31, 1
          %s585 = scalar_select %p584, %s31, 1
          %s586 = smul.addr %s585, 8
          %s587 = scalar_lea.vmem %s1, %s586
        $region88: #{tpu_custom_call.1} parent=79 // pred_fallthru
          _
      $region80: #{tpu_custom_call.1} parent=5 // pred_fallthru
        _
      %p588 = scmp.le.s32.totalorder 1, %s31
      %p589 = scmp.lt.s32.totalorder %s31, 3
      %p590 = pnand %p588, %p589
      %p591 = pneg %p590
      // Predicated region
      $region89: #{tpu_custom_call.1} parent=5 // pred_check
        _
      $region90: #{tpu_custom_call.1} parent=5 // pred_check_branch
        %593 = sbr.rel (%p590) target = $region92
      $region91: #{tpu_custom_call.1} parent=5 // pred_region
        %s594 = ssub.s32 %s31, 1
        // Predicated region
        $region93: #{tpu_custom_call.1} parent=91 // pred_check
          %p595 = pneg %p125
        $region94: #{tpu_custom_call.1} parent=91 // pred_check_branch
          %597 = sbr.rel (%p595) target = $region96
        $region95: #{tpu_custom_call.1} parent=91 // pred_region
          %598 = dma.done [#allocation3], 16
        $region96: #{tpu_custom_call.1} parent=91 // pred_fallthru
          _
        // Predicated region
        $region97: #{tpu_custom_call.1} parent=91 // pred_check
          %p599 = pneg %p146
        $region98: #{tpu_custom_call.1} parent=91 // pred_check_branch
          %601 = sbr.rel (%p599) target = $region100
        $region99: #{tpu_custom_call.1} parent=91 // pred_region
          %602 = dma.done [#allocation6], 256
        $region100: #{tpu_custom_call.1} parent=91 // pred_fallthru
          _
        // Predicated region
        $region101: #{tpu_custom_call.1} parent=91 // pred_check
          %p603 = pneg %p167
        $region102: #{tpu_custom_call.1} parent=91 // pred_check_branch
          %605 = sbr.rel (%p603) target = $region104
        $region103: #{tpu_custom_call.1} parent=91 // pred_region
          %606 = dma.done [#allocation6], 16
        $region104: #{tpu_custom_call.1} parent=91 // pred_fallthru
          _
        // Predicated region
        $region105: #{tpu_custom_call.1} parent=91 // pred_check
          %p607 = pneg %p188
        $region106: #{tpu_custom_call.1} parent=91 // pred_check_branch
          %609 = sbr.rel (%p607) target = $region108
        $region107: #{tpu_custom_call.1} parent=91 // pred_region
          %610 = dma.done [#allocation9], 256
        $region108: #{tpu_custom_call.1} parent=91 // pred_fallthru
          _
        // Predicated region
        $region109: #{tpu_custom_call.1} parent=91 // pred_check
          %p611 = pneg %p209
        $region110: #{tpu_custom_call.1} parent=91 // pred_check_branch
          %613 = sbr.rel (%p611) target = $region112
        $region111: #{tpu_custom_call.1} parent=91 // pred_region
          %614 = dma.done [#allocation9], 16
        $region112: #{tpu_custom_call.1} parent=91 // pred_fallthru
          _
        // Predicated region
        $region113: #{tpu_custom_call.1} parent=91 // pred_check
          %p615 = pneg %p230
        $region114: #{tpu_custom_call.1} parent=91 // pred_check_branch
          %617 = sbr.rel (%p615) target = $region116
        $region115: #{tpu_custom_call.1} parent=91 // pred_region
          %618 = dma.done [#allocation12], 256
        $region116: #{tpu_custom_call.1} parent=91 // pred_fallthru
          _
        // Predicated region
        $region117: #{tpu_custom_call.1} parent=91 // pred_check
          %p619 = pneg %p251
        $region118: #{tpu_custom_call.1} parent=91 // pred_check_branch
          %621 = sbr.rel (%p619) target = $region120
        $region119: #{tpu_custom_call.1} parent=91 // pred_region
          %622 = dma.done [#allocation12], 16
        $region120: #{tpu_custom_call.1} parent=91 // pred_fallthru
          _
        %p623 = scmp.lt.s32.totalorder %s36, 1
        %s624 = scalar_select %p623, %s36, 1
        %s625 = smul.addr %s624, 8
        %s626 = scalar_lea.vmem %s0, %s625
        %p627 = pneg %p57
        %p628 = pneg %p54
        %p629 = scmp.lt.s32.totalorder %s36, 1
        %s630 = scalar_select %p629, %s36, 1
        %s631 = smul.addr %s630, 8
        %s632 = scalar_lea.vmem %s1, %s631
        %p633 = pneg %p83
        %p634 = pneg %p80
        %p635 = pneg %p104
        %p636 = pneg %p101
        %p637 = pneg %p125
        %p638 = pneg %p122
        %p639 = pneg %p146
        %p640 = pneg %p143
        %p641 = pneg %p167
        %p642 = pneg %p164
        %p643 = pneg %p188
        %p644 = pneg %p185
        %p645 = pneg %p209
        %p646 = pneg %p206
        %p647 = pneg %p230
        %p648 = pneg %p227
        %p649 = pneg %p251
        %p650 = pneg %p248
        %p651 = pneg %p272
        %p652 = pneg %p269
        %p653 = pneg %p293
        %p654 = pneg %p290
        %p655 = pneg %p314
        %p656 = pneg %p311
        %p657 = pneg %p335
        %p658 = pneg %p332
        %p659 = pneg %p356
        %p660 = pneg %p353
        %p661 = pneg %p377
        %p662 = pneg %p374
        %p663 = pneg %p398
        %p664 = pneg %p395
        %p665 = pneg %p419
        %p666 = pneg %p416
        %p667 = pneg %p445
        %p668 = pneg %p442
        %s669 = sand.u32 %s432, 1
        %s670 = scalar_lea.sflag [#allocation4], %s669
        %s671 = sand.u32 %s432, 1
        %s672 = smul.addr %s671, 8
        %s673 = scalar_lea.vmem [#allocation14], %s672
        %p674 = scmp.lt.s32.totalorder %s36, 1
        %s675 = scalar_select %p674, %s36, 1
        %s676 = smul.addr %s675, 8
        %s677 = scalar_lea.vmem %s0, %s676
        %p678 = scmp.lt.s32.totalorder %s36, 1
        %s679 = scalar_select %p678, %s36, 1
        %s680 = smul.addr %s679, 8
        %s681 = scalar_lea.vmem %s1, %s680
        %v683 = vld [vmem:[%s677] sm:$0xff]
        %v684 = vpack.c.bf16 %v683, %v683
        %v685 = vld [vmem:[%s681] sm:$0xff]
        %vm686 = vcmp.gt.f32.partialorder %v685, 0.0
        %v687 = vsel %vm686, 0.0, -10000.0
        %v688 = vld [vmem:[%s2] sm:$0xf]
        %v689 = vld [vmem:[%s2 + $0x4] sm:$0xf]
        %v690 = vld [vmem:[%s2 + $0x8] sm:$0xf]
        %v691 = vld [vmem:[%s2 + $0xc] sm:$0xf]
        %v692 = vld [vmem:[#allocation2] sm:$0x1]
        %v694 = vlaneseq
        %v695 = vshrl.u32 %v694, 7
        %v696 = vsub.s32 0, %v695
        %v697 = vrot.slane %v692, %v696
        %v703 = vunpack.c.l.b16 %v688
        %v704 = vunpack.c.l.b16 %v689
        %v705 = vunpack.c.l.b16 %v690
        %v706 = vunpack.c.l.b16 %v691
        %v707 = vpack.c.b16 %v704, %v703
        %v708 = vpack.c.b16 %v706, %v705
        %vm711 = vcmask 261120
        %v713 = vsel %vm711, %v684, 0
        %715 = vmatprep.subr.bf16.mxu0 0
        %716 = vmatpush1.bf16.msra.mxu0 0
        %717 = vmatprep.subr.bf16.mxu0 0
        %718 = vmatpush1.bf16.msra.mxu0 0
        %719 = vmatprep.subr.bf16.mxu0 0
        %720 = vmatpush1.bf16.msra.mxu0 0
        %721 = vmatprep.subr.bf16.mxu0 0
        %722 = vmatpush1.bf16.msra.mxu0 0
        %723 = vmatprep.subr.bf16.mxu0 0
        %724 = vmatpush1.bf16.msra.mxu0 0
        %725 = vmatprep.subr.bf16.mxu0 0
        %726 = vmatpush1.bf16.msra.mxu0 0
        %727 = vmatprep.subr.bf16.mxu0 0
        %728 = vmatpush1.bf16.msra.mxu0 %v708
        %729 = vmatprep.subr.bf16.mxu0 0
        %730 = vmatpush1.bf16.msra.mxu0 %v707
        %731 = vmatprep.subr.bf16.mxu0 0
        %732 = vmatpush2.bf16.msra.mxu0 0
        %733 = vmatprep.subr.bf16.mxu0 0
        %734 = vmatpush2.bf16.msra.mxu0 0
        %735 = vmatprep.subr.bf16.mxu0 0
        %736 = vmatpush2.bf16.msra.mxu0 0
        %737 = vmatprep.subr.bf16.mxu0 0
        %738 = vmatpush2.bf16.msra.mxu0 0
        %739 = vmatprep.subr.bf16.mxu0 0
        %740 = vmatpush2.bf16.msra.mxu0 0
        %741 = vmatprep.subr.bf16.mxu0 0
        %742 = vmatpush2.bf16.msra.mxu0 0
        %743 = vmatprep.subr.bf16.mxu0 0
        %744 = vmatpush2.bf16.msra.mxu0 0
        %745 = vmatprep.subr.bf16.mxu0 0
        %746 = vmatpush2.bf16.msra.mxu0 0
        %747 = vmatprep.mubr.bf16.mxu0 0
        %748 = vmatmul.mubr.bf16.gmra.mxu0 %v713
        %v749 = vpop.f32.mrf.mxu0
        %v750 = vadd.f32 %v697, %v749
        %v751 = vpop.f32.mrf.mxu0
        %v752 = vpop.f32.mrf.mxu0
        %v753 = vpop.f32.mrf.mxu0
        %754 = vdwg.mxu0
        %v755 = vld [vmem:[#allocation5] sm:$0xf]
        %v756 = vld [vmem:[#allocation5 + $0x4] sm:$0xf]
        %v757 = vld [vmem:[#allocation5 + $0x8] sm:$0xf]
        %v758 = vld [vmem:[#allocation5 + $0xc] sm:$0xf]
        %v759 = vld [vmem:[#allocation7] sm:$0x1]
        %v761 = vlaneseq
        %v762 = vshrl.u32 %v761, 7
        %v763 = vsub.s32 0, %v762
        %v764 = vrot.slane %v759, %v763
        %v770 = vunpack.c.l.b16 %v755
        %v771 = vunpack.c.l.b16 %v756
        %v772 = vunpack.c.l.b16 %v757
        %v773 = vunpack.c.l.b16 %v758
        %v774 = vpack.c.b16 %v771, %v770
        %v775 = vpack.c.b16 %v773, %v772
        %778 = vmatprep.subr.bf16.mxu0 0
        %779 = vmatpush1.bf16.msra.mxu0 0
        %780 = vmatprep.subr.bf16.mxu0 0
        %781 = vmatpush1.bf16.msra.mxu0 0
        %782 = vmatprep.subr.bf16.mxu0 0
        %783 = vmatpush1.bf16.msra.mxu0 0
        %784 = vmatprep.subr.bf16.mxu0 0
        %785 = vmatpush1.bf16.msra.mxu0 0
        %786 = vmatprep.subr.bf16.mxu0 0
        %787 = vmatpush1.bf16.msra.mxu0 0
        %788 = vmatprep.subr.bf16.mxu0 0
        %789 = vmatpush1.bf16.msra.mxu0 0
        %790 = vmatprep.subr.bf16.mxu0 0
        %791 = vmatpush1.bf16.msra.mxu0 %v775
        %792 = vmatprep.subr.bf16.mxu0 0
        %793 = vmatpush1.bf16.msra.mxu0 %v774
        %794 = vmatprep.subr.bf16.mxu0 0
        %795 = vmatpush2.bf16.msra.mxu0 0
        %796 = vmatprep.subr.bf16.mxu0 0
        %797 = vmatpush2.bf16.msra.mxu0 0
        %798 = vmatprep.subr.bf16.mxu0 0
        %799 = vmatpush2.bf16.msra.mxu0 0
        %800 = vmatprep.subr.bf16.mxu0 0
        %801 = vmatpush2.bf16.msra.mxu0 0
        %802 = vmatprep.subr.bf16.mxu0 0
        %803 = vmatpush2.bf16.msra.mxu0 0
        %804 = vmatprep.subr.bf16.mxu0 0
        %805 = vmatpush2.bf16.msra.mxu0 0
        %806 = vmatprep.subr.bf16.mxu0 0
        %807 = vmatpush2.bf16.msra.mxu0 0
        %808 = vmatprep.subr.bf16.mxu0 0
        %809 = vmatpush2.bf16.msra.mxu0 0
        %810 = vmatprep.mubr.bf16.mxu0 0
        %811 = vmatmul.mubr.bf16.gmra.mxu0 %v713
        %v812 = vpop.f32.mrf.mxu0
        %v813 = vadd.f32 %v764, %v812
        %v814 = vpop.f32.mrf.mxu0
        %v815 = vpop.f32.mrf.mxu0
        %v816 = vpop.f32.mrf.mxu0
        %817 = vdwg.mxu0
        %v818 = vld [vmem:[#allocation8] sm:$0xf]
        %v819 = vld [vmem:[#allocation8 + $0x4] sm:$0xf]
        %v820 = vld [vmem:[#allocation8 + $0x8] sm:$0xf]
        %v821 = vld [vmem:[#allocation8 + $0xc] sm:$0xf]
        %v822 = vld [vmem:[#allocation10] sm:$0x1]
        %v824 = vlaneseq
        %v825 = vshrl.u32 %v824, 7
        %v826 = vsub.s32 0, %v825
        %v827 = vrot.slane %v822, %v826
        %v833 = vunpack.c.l.b16 %v818
        %v834 = vunpack.c.l.b16 %v819
        %v835 = vunpack.c.l.b16 %v820
        %v836 = vunpack.c.l.b16 %v821
        %v837 = vpack.c.b16 %v834, %v833
        %v838 = vpack.c.b16 %v836, %v835
        %841 = vmatprep.subr.bf16.mxu0 0
        %842 = vmatpush1.bf16.msra.mxu0 0
        %843 = vmatprep.subr.bf16.mxu0 0
        %844 = vmatpush1.bf16.msra.mxu0 0
        %845 = vmatprep.subr.bf16.mxu0 0
        %846 = vmatpush1.bf16.msra.mxu0 0
        %847 = vmatprep.subr.bf16.mxu0 0
        %848 = vmatpush1.bf16.msra.mxu0 0
        %849 = vmatprep.subr.bf16.mxu0 0
        %850 = vmatpush1.bf16.msra.mxu0 0
        %851 = vmatprep.subr.bf16.mxu0 0
        %852 = vmatpush1.bf16.msra.mxu0 0
        %853 = vmatprep.subr.bf16.mxu0 0
        %854 = vmatpush1.bf16.msra.mxu0 %v838
        %855 = vmatprep.subr.bf16.mxu0 0
        %856 = vmatpush1.bf16.msra.mxu0 %v837
        %857 = vmatprep.subr.bf16.mxu0 0
        %858 = vmatpush2.bf16.msra.mxu0 0
        %859 = vmatprep.subr.bf16.mxu0 0
        %860 = vmatpush2.bf16.msra.mxu0 0
        %861 = vmatprep.subr.bf16.mxu0 0
        %862 = vmatpush2.bf16.msra.mxu0 0
        %863 = vmatprep.subr.bf16.mxu0 0
        %864 = vmatpush2.bf16.msra.mxu0 0
        %865 = vmatprep.subr.bf16.mxu0 0
        %866 = vmatpush2.bf16.msra.mxu0 0
        %867 = vmatprep.subr.bf16.mxu0 0
        %868 = vmatpush2.bf16.msra.mxu0 0
        %869 = vmatprep.subr.bf16.mxu0 0
        %870 = vmatpush2.bf16.msra.mxu0 0
        %871 = vmatprep.subr.bf16.mxu0 0
        %872 = vmatpush2.bf16.msra.mxu0 0
        %873 = vmatprep.mubr.bf16.mxu0 0
        %874 = vmatmul.mubr.bf16.gmra.mxu0 %v713
        %v875 = vpop.f32.mrf.mxu0
        %v876 = vadd.f32 %v827, %v875
        %v877 = vpop.f32.mrf.mxu0
        %v878 = vpop.f32.mrf.mxu0
        %v879 = vpop.f32.mrf.mxu0
        %880 = vdwg.mxu0
        %882 = vrot.lane.b32.xlu0 %v750, 120
        %v883 = vpop.permute.xlu0 %882
        %885 = vrot.lane.b32.xlu0 %v750, 112
        %v886 = vpop.permute.xlu0 %885
        %888 = vrot.lane.b32.xlu0 %v750, 104
        %v889 = vpop.permute.xlu0 %888
        %v891 = vcombine.low %v750, %v886
        %v892 = vcombine.high %v750, %v886
        %v894 = vunpack.c.l.s4 1983009808
        %v895 = vunpack.c.0.s8 %v894
        %v896 = vlaneseq
        %v897 = vshrl.u32 %v896, 7
        %v898 = vsub.s32 %v895, %v897
        %v899 = vrot.slane %v891, %v898
        %v901 = vunpack.c.l.s4 1983009808
        %v902 = vunpack.c.0.s8 %v901
        %v903 = vlaneseq
        %v904 = vshrl.u32 %v903, 7
        %v905 = vsub.s32 %v902, %v904
        %v906 = vrot.slane %v892, %v905
        %v907 = vcombine.low %v883, %v889
        %v908 = vcombine.high %v883, %v889
        %v910 = vunpack.c.l.s4 1983009808
        %v911 = vunpack.c.0.s8 %v910
        %v912 = vlaneseq
        %v913 = vshrl.u32 %v912, 7
        %v914 = vsub.s32 %v911, %v913
        %v915 = vrot.slane %v907, %v914
        %v917 = vunpack.c.l.s4 1983009808
        %v918 = vunpack.c.0.s8 %v917
        %v919 = vlaneseq
        %v920 = vshrl.u32 %v919, 7
        %v921 = vsub.s32 %v918, %v920
        %v922 = vrot.slane %v908, %v921
        %v923 = vcombine.low %v899, %v915
        %v924 = vcombine.high %v899, %v915
        %v926 = vunpack.c.l.s4 1934713408
        %v927 = vunpack.c.0.s8 %v926
        %v928 = vlaneseq
        %v929 = vshrl.u32 %v928, 7
        %v930 = vsub.s32 %v927, %v929
        %v931 = vrot.slane %v923, %v930
        %v933 = vunpack.c.l.s4 1934713408
        %v934 = vunpack.c.0.s8 %v933
        %v935 = vlaneseq
        %v936 = vshrl.u32 %v935, 7
        %v937 = vsub.s32 %v934, %v936
        %v938 = vrot.slane %v924, %v937
        %v939 = vcombine.low %v906, %v922
        %v940 = vcombine.high %v906, %v922
        %v942 = vunpack.c.l.s4 1934713408
        %v943 = vunpack.c.0.s8 %v942
        %v944 = vlaneseq
        %v945 = vshrl.u32 %v944, 7
        %v946 = vsub.s32 %v943, %v945
        %v947 = vrot.slane %v939, %v946
        %v949 = vunpack.c.l.s4 1934713408
        %v950 = vunpack.c.0.s8 %v949
        %v951 = vlaneseq
        %v952 = vshrl.u32 %v951, 7
        %v953 = vsub.s32 %v950, %v952
        %v954 = vrot.slane %v940, %v953
        %v955 = vcombine.high %v931, 0.0
        %v956 = vcombine.high %v938, 0.0
        %v957 = vcombine.high %v947, 0.0
        %v958 = vcombine.high %v954, 0.0
        %v959 = vcombine.low %v931, %v938
        %v961 = vunpack.c.l.s4 1983009808
        %v962 = vunpack.c.0.s8 %v961
        %v963 = vlaneseq
        %v964 = vshrl.u32 %v963, 7
        %v965 = vsub.s32 %v962, %v964
        %v966 = vrot.slane %v959, %v965
        %v967 = vcombine.low %v955, %v956
        %v969 = vunpack.c.l.s4 1983009808
        %v970 = vunpack.c.0.s8 %v969
        %v971 = vlaneseq
        %v972 = vshrl.u32 %v971, 7
        %v973 = vsub.s32 %v970, %v972
        %v974 = vrot.slane %v967, %v973
        %v975 = vcombine.low %v947, %v954
        %v977 = vunpack.c.l.s4 1983009808
        %v978 = vunpack.c.0.s8 %v977
        %v979 = vlaneseq
        %v980 = vshrl.u32 %v979, 7
        %v981 = vsub.s32 %v978, %v980
        %v982 = vrot.slane %v975, %v981
        %v983 = vcombine.low %v957, %v958
        %v985 = vunpack.c.l.s4 1983009808
        %v986 = vunpack.c.0.s8 %v985
        %v987 = vlaneseq
        %v988 = vshrl.u32 %v987, 7
        %v989 = vsub.s32 %v986, %v988
        %v990 = vrot.slane %v983, %v989
        %v991 = vcombine.low %v966, %v974
        %v992 = vcombine.high %v966, %v974
        %v994 = vunpack.c.l.s4 1934713408
        %v995 = vunpack.c.0.s8 %v994
        %v996 = vlaneseq
        %v997 = vshrl.u32 %v996, 7
        %v998 = vsub.s32 %v995, %v997
        %v999 = vrot.slane %v991, %v998
        %v1001 = vunpack.c.l.s4 1934713408
        %v1002 = vunpack.c.0.s8 %v1001
        %v1003 = vlaneseq
        %v1004 = vshrl.u32 %v1003, 7
        %v1005 = vsub.s32 %v1002, %v1004
        %v1006 = vrot.slane %v992, %v1005
        %v1007 = vcombine.low %v982, %v990
        %v1008 = vcombine.high %v982, %v990
        %v1010 = vunpack.c.l.s4 1934713408
        %v1011 = vunpack.c.0.s8 %v1010
        %v1012 = vlaneseq
        %v1013 = vshrl.u32 %v1012, 7
        %v1014 = vsub.s32 %v1011, %v1013
        %v1015 = vrot.slane %v1007, %v1014
        %v1017 = vunpack.c.l.s4 1934713408
        %v1018 = vunpack.c.0.s8 %v1017
        %v1019 = vlaneseq
        %v1020 = vshrl.u32 %v1019, 7
        %v1021 = vsub.s32 %v1018, %v1020
        %v1022 = vrot.slane %v1008, %v1021
        %v1023 = vcombine.low %v999, %v1015
        %v1024 = vcombine.high %v999, %v1015
        %v1025 = vcombine.low %v1006, %v1022
        %v1026 = vcombine.high %v1006, %v1022
        %v1027 = vpack.c.bf16 %v1023, %v1023
        %v1028 = vpack.c.bf16 %v1024, %v1024
        %v1029 = vpack.c.bf16 %v1025, %v1025
        %v1030 = vpack.c.bf16 %v1026, %v1026
        %1032 = vrot.lane.b32.xlu0 %v813, 120
        %v1033 = vpop.permute.xlu0 %1032
        %1035 = vrot.lane.b32.xlu0 %v813, 112
        %v1036 = vpop.permute.xlu0 %1035
        %1038 = vrot.lane.b32.xlu0 %v813, 104
        %v1039 = vpop.permute.xlu0 %1038
        %v1041 = vcombine.low %v813, %v1036
        %v1042 = vcombine.high %v813, %v1036
        %v1044 = vunpack.c.l.s4 1983009808
        %v1045 = vunpack.c.0.s8 %v1044
        %v1046 = vlaneseq
        %v1047 = vshrl.u32 %v1046, 7
        %v1048 = vsub.s32 %v1045, %v1047
        %v1049 = vrot.slane %v1041, %v1048
        %v1051 = vunpack.c.l.s4 1983009808
        %v1052 = vunpack.c.0.s8 %v1051
        %v1053 = vlaneseq
        %v1054 = vshrl.u32 %v1053, 7
        %v1055 = vsub.s32 %v1052, %v1054
        %v1056 = vrot.slane %v1042, %v1055
        %v1057 = vcombine.low %v1033, %v1039
        %v1058 = vcombine.high %v1033, %v1039
        %v1060 = vunpack.c.l.s4 1983009808
        %v1061 = vunpack.c.0.s8 %v1060
        %v1062 = vlaneseq
        %v1063 = vshrl.u32 %v1062, 7
        %v1064 = vsub.s32 %v1061, %v1063
        %v1065 = vrot.slane %v1057, %v1064
        %v1067 = vunpack.c.l.s4 1983009808
        %v1068 = vunpack.c.0.s8 %v1067
        %v1069 = vlaneseq
        %v1070 = vshrl.u32 %v1069, 7
        %v1071 = vsub.s32 %v1068, %v1070
        %v1072 = vrot.slane %v1058, %v1071
        %v1073 = vcombine.low %v1049, %v1065
        %v1074 = vcombine.high %v1049, %v1065
        %v1076 = vunpack.c.l.s4 1934713408
        %v1077 = vunpack.c.0.s8 %v1076
        %v1078 = vlaneseq
        %v1079 = vshrl.u32 %v1078, 7
        %v1080 = vsub.s32 %v1077, %v1079
        %v1081 = vrot.slane %v1073, %v1080
        %v1083 = vunpack.c.l.s4 1934713408
        %v1084 = vunpack.c.0.s8 %v1083
        %v1085 = vlaneseq
        %v1086 = vshrl.u32 %v1085, 7
        %v1087 = vsub.s32 %v1084, %v1086
        %v1088 = vrot.slane %v1074, %v1087
        %v1089 = vcombine.low %v1056, %v1072
        %v1090 = vcombine.high %v1056, %v1072
        %v1092 = vunpack.c.l.s4 1934713408
        %v1093 = vunpack.c.0.s8 %v1092
        %v1094 = vlaneseq
        %v1095 = vshrl.u32 %v1094, 7
        %v1096 = vsub.s32 %v1093, %v1095
        %v1097 = vrot.slane %v1089, %v1096
        %v1099 = vunpack.c.l.s4 1934713408
        %v1100 = vunpack.c.0.s8 %v1099
        %v1101 = vlaneseq
        %v1102 = vshrl.u32 %v1101, 7
        %v1103 = vsub.s32 %v1100, %v1102
        %v1104 = vrot.slane %v1090, %v1103
        %v1105 = vcombine.high %v1081, 0.0
        %v1106 = vcombine.high %v1088, 0.0
        %v1107 = vcombine.high %v1097, 0.0
        %v1108 = vcombine.high %v1104, 0.0
        %v1109 = vcombine.low %v1081, %v1088
        %v1111 = vunpack.c.l.s4 1983009808
        %v1112 = vunpack.c.0.s8 %v1111
        %v1113 = vlaneseq
        %v1114 = vshrl.u32 %v1113, 7
        %v1115 = vsub.s32 %v1112, %v1114
        %v1116 = vrot.slane %v1109, %v1115
        %v1117 = vcombine.low %v1105, %v1106
        %v1119 = vunpack.c.l.s4 1983009808
        %v1120 = vunpack.c.0.s8 %v1119
        %v1121 = vlaneseq
        %v1122 = vshrl.u32 %v1121, 7
        %v1123 = vsub.s32 %v1120, %v1122
        %v1124 = vrot.slane %v1117, %v1123
        %v1125 = vcombine.low %v1097, %v1104
        %v1127 = vunpack.c.l.s4 1983009808
        %v1128 = vunpack.c.0.s8 %v1127
        %v1129 = vlaneseq
        %v1130 = vshrl.u32 %v1129, 7
        %v1131 = vsub.s32 %v1128, %v1130
        %v1132 = vrot.slane %v1125, %v1131
        %v1133 = vcombine.low %v1107, %v1108
        %v1135 = vunpack.c.l.s4 1983009808
        %v1136 = vunpack.c.0.s8 %v1135
        %v1137 = vlaneseq
        %v1138 = vshrl.u32 %v1137, 7
        %v1139 = vsub.s32 %v1136, %v1138
        %v1140 = vrot.slane %v1133, %v1139
        %v1141 = vcombine.low %v1116, %v1124
        %v1142 = vcombine.high %v1116, %v1124
        %v1144 = vunpack.c.l.s4 1934713408
        %v1145 = vunpack.c.0.s8 %v1144
        %v1146 = vlaneseq
        %v1147 = vshrl.u32 %v1146, 7
        %v1148 = vsub.s32 %v1145, %v1147
        %v1149 = vrot.slane %v1141, %v1148
        %v1151 = vunpack.c.l.s4 1934713408
        %v1152 = vunpack.c.0.s8 %v1151
        %v1153 = vlaneseq
        %v1154 = vshrl.u32 %v1153, 7
        %v1155 = vsub.s32 %v1152, %v1154
        %v1156 = vrot.slane %v1142, %v1155
        %v1157 = vcombine.low %v1132, %v1140
        %v1158 = vcombine.high %v1132, %v1140
        %v1160 = vunpack.c.l.s4 1934713408
        %v1161 = vunpack.c.0.s8 %v1160
        %v1162 = vlaneseq
        %v1163 = vshrl.u32 %v1162, 7
        %v1164 = vsub.s32 %v1161, %v1163
        %v1165 = vrot.slane %v1157, %v1164
        %v1167 = vunpack.c.l.s4 1934713408
        %v1168 = vunpack.c.0.s8 %v1167
        %v1169 = vlaneseq
        %v1170 = vshrl.u32 %v1169, 7
        %v1171 = vsub.s32 %v1168, %v1170
        %v1172 = vrot.slane %v1158, %v1171
        %v1173 = vcombine.low %v1149, %v1165
        %v1174 = vcombine.high %v1149, %v1165
        %v1175 = vcombine.low %v1156, %v1172
        %v1176 = vcombine.high %v1156, %v1172
        %v1177 = vpack.c.bf16 %v1173, %v1173
        %v1178 = vpack.c.bf16 %v1174, %v1174
        %v1179 = vpack.c.bf16 %v1175, %v1175
        %v1180 = vpack.c.bf16 %v1176, %v1176
        %1182 = vrot.lane.b32.xlu0 %v876, 120
        %v1183 = vpop.permute.xlu0 %1182
        %1185 = vrot.lane.b32.xlu0 %v876, 112
        %v1186 = vpop.permute.xlu0 %1185
        %1188 = vrot.lane.b32.xlu0 %v876, 104
        %v1189 = vpop.permute.xlu0 %1188
        %v1191 = vcombine.low %v876, %v1186
        %v1192 = vcombine.high %v876, %v1186
        %v1194 = vunpack.c.l.s4 1983009808
        %v1195 = vunpack.c.0.s8 %v1194
        %v1196 = vlaneseq
        %v1197 = vshrl.u32 %v1196, 7
        %v1198 = vsub.s32 %v1195, %v1197
        %v1199 = vrot.slane %v1191, %v1198
        %v1201 = vunpack.c.l.s4 1983009808
        %v1202 = vunpack.c.0.s8 %v1201
        %v1203 = vlaneseq
        %v1204 = vshrl.u32 %v1203, 7
        %v1205 = vsub.s32 %v1202, %v1204
        %v1206 = vrot.slane %v1192, %v1205
        %v1207 = vcombine.low %v1183, %v1189
        %v1208 = vcombine.high %v1183, %v1189
        %v1210 = vunpack.c.l.s4 1983009808
        %v1211 = vunpack.c.0.s8 %v1210
        %v1212 = vlaneseq
        %v1213 = vshrl.u32 %v1212, 7
        %v1214 = vsub.s32 %v1211, %v1213
        %v1215 = vrot.slane %v1207, %v1214
        %v1217 = vunpack.c.l.s4 1983009808
        %v1218 = vunpack.c.0.s8 %v1217
        %v1219 = vlaneseq
        %v1220 = vshrl.u32 %v1219, 7
        %v1221 = vsub.s32 %v1218, %v1220
        %v1222 = vrot.slane %v1208, %v1221
        %v1223 = vcombine.low %v1199, %v1215
        %v1224 = vcombine.high %v1199, %v1215
        %v1226 = vunpack.c.l.s4 1934713408
        %v1227 = vunpack.c.0.s8 %v1226
        %v1228 = vlaneseq
        %v1229 = vshrl.u32 %v1228, 7
        %v1230 = vsub.s32 %v1227, %v1229
        %v1231 = vrot.slane %v1223, %v1230
        %v1233 = vunpack.c.l.s4 1934713408
        %v1234 = vunpack.c.0.s8 %v1233
        %v1235 = vlaneseq
        %v1236 = vshrl.u32 %v1235, 7
        %v1237 = vsub.s32 %v1234, %v1236
        %v1238 = vrot.slane %v1224, %v1237
        %v1239 = vcombine.low %v1206, %v1222
        %v1240 = vcombine.high %v1206, %v1222
        %v1242 = vunpack.c.l.s4 1934713408
        %v1243 = vunpack.c.0.s8 %v1242
        %v1244 = vlaneseq
        %v1245 = vshrl.u32 %v1244, 7
        %v1246 = vsub.s32 %v1243, %v1245
        %v1247 = vrot.slane %v1239, %v1246
        %v1249 = vunpack.c.l.s4 1934713408
        %v1250 = vunpack.c.0.s8 %v1249
        %v1251 = vlaneseq
        %v1252 = vshrl.u32 %v1251, 7
        %v1253 = vsub.s32 %v1250, %v1252
        %v1254 = vrot.slane %v1240, %v1253
        %v1255 = vcombine.high %v1231, 0.0
        %v1256 = vcombine.high %v1238, 0.0
        %v1257 = vcombine.high %v1247, 0.0
        %v1258 = vcombine.high %v1254, 0.0
        %v1259 = vcombine.low %v1231, %v1238
        %v1261 = vunpack.c.l.s4 1983009808
        %v1262 = vunpack.c.0.s8 %v1261
        %v1263 = vlaneseq
        %v1264 = vshrl.u32 %v1263, 7
        %v1265 = vsub.s32 %v1262, %v1264
        %v1266 = vrot.slane %v1259, %v1265
        %v1267 = vcombine.low %v1255, %v1256
        %v1269 = vunpack.c.l.s4 1983009808
        %v1270 = vunpack.c.0.s8 %v1269
        %v1271 = vlaneseq
        %v1272 = vshrl.u32 %v1271, 7
        %v1273 = vsub.s32 %v1270, %v1272
        %v1274 = vrot.slane %v1267, %v1273
        %v1275 = vcombine.low %v1247, %v1254
        %v1277 = vunpack.c.l.s4 1983009808
        %v1278 = vunpack.c.0.s8 %v1277
        %v1279 = vlaneseq
        %v1280 = vshrl.u32 %v1279, 7
        %v1281 = vsub.s32 %v1278, %v1280
        %v1282 = vrot.slane %v1275, %v1281
        %v1283 = vcombine.low %v1257, %v1258
        %v1285 = vunpack.c.l.s4 1983009808
        %v1286 = vunpack.c.0.s8 %v1285
        %v1287 = vlaneseq
        %v1288 = vshrl.u32 %v1287, 7
        %v1289 = vsub.s32 %v1286, %v1288
        %v1290 = vrot.slane %v1283, %v1289
        %v1291 = vcombine.low %v1266, %v1274
        %v1292 = vcombine.high %v1266, %v1274
        %v1294 = vunpack.c.l.s4 1934713408
        %v1295 = vunpack.c.0.s8 %v1294
        %v1296 = vlaneseq
        %v1297 = vshrl.u32 %v1296, 7
        %v1298 = vsub.s32 %v1295, %v1297
        %v1299 = vrot.slane %v1291, %v1298
        %v1301 = vunpack.c.l.s4 1934713408
        %v1302 = vunpack.c.0.s8 %v1301
        %v1303 = vlaneseq
        %v1304 = vshrl.u32 %v1303, 7
        %v1305 = vsub.s32 %v1302, %v1304
        %v1306 = vrot.slane %v1292, %v1305
        %v1307 = vcombine.low %v1282, %v1290
        %v1308 = vcombine.high %v1282, %v1290
        %v1310 = vunpack.c.l.s4 1934713408
        %v1311 = vunpack.c.0.s8 %v1310
        %v1312 = vlaneseq
        %v1313 = vshrl.u32 %v1312, 7
        %v1314 = vsub.s32 %v1311, %v1313
        %v1315 = vrot.slane %v1307, %v1314
        %v1317 = vunpack.c.l.s4 1934713408
        %v1318 = vunpack.c.0.s8 %v1317
        %v1319 = vlaneseq
        %v1320 = vshrl.u32 %v1319, 7
        %v1321 = vsub.s32 %v1318, %v1320
        %v1322 = vrot.slane %v1308, %v1321
        %v1323 = vcombine.low %v1299, %v1315
        %v1324 = vcombine.high %v1299, %v1315
        %v1325 = vcombine.low %v1306, %v1322
        %v1326 = vcombine.high %v1306, %v1322
        %v1327 = vpack.c.bf16 %v1323, %v1323
        %v1328 = vpack.c.bf16 %v1324, %v1324
        %v1329 = vpack.c.bf16 %v1325, %v1325
        %v1330 = vpack.c.bf16 %v1326, %v1326
        %vm1331 = vcmask 64512
        %v1333 = vsel %vm1331, %v1027, 0
        %v1336 = vsel %vm1331, %v1177, 0
        %1338 = vmatprep.subr.bf16.mxu0 0
        %1339 = vmatpush1.bf16.xpose.msra.mxu0 0
        %1340 = vmatprep.subr.bf16.mxu0 0
        %1341 = vmatpush1.bf16.xpose.msra.mxu0 0
        %1342 = vmatprep.subr.bf16.mxu0 0
        %1343 = vmatpush1.bf16.xpose.msra.mxu0 0
        %1344 = vmatprep.subr.bf16.mxu0 0
        %1345 = vmatpush1.bf16.xpose.msra.mxu0 0
        %1346 = vmatprep.subr.bf16.mxu0 0
        %1347 = vmatpush1.bf16.xpose.msra.mxu0 0
        %1348 = vmatprep.subr.bf16.mxu0 0
        %1349 = vmatpush1.bf16.xpose.msra.mxu0 0
        %1350 = vmatprep.subr.bf16.mxu0 0
        %1351 = vmatpush1.bf16.xpose.msra.mxu0 0
        %1352 = vmatprep.subr.bf16.mxu0 0
        %1353 = vmatpush1.bf16.xpose.msra.mxu0 %v1336
        %1354 = vmatprep.subr.bf16.mxu0 0
        %1355 = vmatpush2.bf16.xpose.msra.mxu0 0
        %1356 = vmatprep.subr.bf16.mxu0 0
        %1357 = vmatpush2.bf16.xpose.msra.mxu0 0
        %1358 = vmatprep.subr.bf16.mxu0 0
        %1359 = vmatpush2.bf16.xpose.msra.mxu0 0
        %1360 = vmatprep.subr.bf16.mxu0 0
        %1361 = vmatpush2.bf16.xpose.msra.mxu0 0
        %1362 = vmatprep.subr.bf16.mxu0 0
        %1363 = vmatpush2.bf16.xpose.msra.mxu0 0
        %1364 = vmatprep.subr.bf16.mxu0 0
        %1365 = vmatpush2.bf16.xpose.msra.mxu0 0
        %1366 = vmatprep.subr.bf16.mxu0 0
        %1367 = vmatpush2.bf16.xpose.msra.mxu0 0
        %1368 = vmatprep.subr.bf16.mxu0 0
        %1369 = vmatpush2.bf16.xpose.msra.mxu0 0
        %1370 = vmatprep.mubr.bf16.mxu0 0
        %1371 = vmatmul.mubr.bf16.gmra.mxu0 %v1333
        %v1372 = vpop.f32.mrf.mxu0
        %v1373 = vadd.f32 0.0, %v1372
        %v1374 = vpop.f32.mrf.mxu0
        %v1375 = vpop.f32.mrf.mxu0
        %v1376 = vpop.f32.mrf.mxu0
        %1377 = vdwg.mxu0
        %v1379 = vsel %vm1331, %v1028, 0
        %v1382 = vsel %vm1331, %v1178, 0
        %1384 = vmatprep.subr.bf16.mxu0 0
        %1385 = vmatpush1.bf16.xpose.msra.mxu0 0
        %1386 = vmatprep.subr.bf16.mxu0 0
        %1387 = vmatpush1.bf16.xpose.msra.mxu0 0
        %1388 = vmatprep.subr.bf16.mxu0 0
        %1389 = vmatpush1.bf16.xpose.msra.mxu0 0
        %1390 = vmatprep.subr.bf16.mxu0 0
        %1391 = vmatpush1.bf16.xpose.msra.mxu0 0
        %1392 = vmatprep.subr.bf16.mxu0 0
        %1393 = vmatpush1.bf16.xpose.msra.mxu0 0
        %1394 = vmatprep.subr.bf16.mxu0 0
        %1395 = vmatpush1.bf16.xpose.msra.mxu0 0
        %1396 = vmatprep.subr.bf16.mxu0 0
        %1397 = vmatpush1.bf16.xpose.msra.mxu0 0
        %1398 = vmatprep.subr.bf16.mxu0 0
        %1399 = vmatpush1.bf16.xpose.msra.mxu0 %v1382
        %1400 = vmatprep.subr.bf16.mxu0 0
        %1401 = vmatpush2.bf16.xpose.msra.mxu0 0
        %1402 = vmatprep.subr.bf16.mxu0 0
        %1403 = vmatpush2.bf16.xpose.msra.mxu0 0
        %1404 = vmatprep.subr.bf16.mxu0 0
        %1405 = vmatpush2.bf16.xpose.msra.mxu0 0
        %1406 = vmatprep.subr.bf16.mxu0 0
        %1407 = vmatpush2.bf16.xpose.msra.mxu0 0
        %1408 = vmatprep.subr.bf16.mxu0 0
        %1409 = vmatpush2.bf16.xpose.msra.mxu0 0
        %1410 = vmatprep.subr.bf16.mxu0 0
        %1411 = vmatpush2.bf16.xpose.msra.mxu0 0
        %1412 = vmatprep.subr.bf16.mxu0 0
        %1413 = vmatpush2.bf16.xpose.msra.mxu0 0
        %1414 = vmatprep.subr.bf16.mxu0 0
        %1415 = vmatpush2.bf16.xpose.msra.mxu0 0
        %1416 = vmatprep.mubr.bf16.mxu0 0
        %1417 = vmatmul.mubr.bf16.gmra.mxu0 %v1379
        %v1418 = vpop.f32.mrf.mxu0
        %v1419 = vadd.f32 0.0, %v1418
        %v1420 = vpop.f32.mrf.mxu0
        %v1421 = vpop.f32.mrf.mxu0
        %v1422 = vpop.f32.mrf.mxu0
        %1423 = vdwg.mxu0
        %v1425 = vsel %vm1331, %v1029, 0
        %v1428 = vsel %vm1331, %v1179, 0
        %1430 = vmatprep.subr.bf16.mxu0 0
        %1431 = vmatpush1.bf16.xpose.msra.mxu0 0
        %1432 = vmatprep.subr.bf16.mxu0 0
        %1433 = vmatpush1.bf16.xpose.msra.mxu0 0
        %1434 = vmatprep.subr.bf16.mxu0 0
        %1435 = vmatpush1.bf16.xpose.msra.mxu0 0
        %1436 = vmatprep.subr.bf16.mxu0 0
        %1437 = vmatpush1.bf16.xpose.msra.mxu0 0
        %1438 = vmatprep.subr.bf16.mxu0 0
        %1439 = vmatpush1.bf16.xpose.msra.mxu0 0
        %1440 = vmatprep.subr.bf16.mxu0 0
        %1441 = vmatpush1.bf16.xpose.msra.mxu0 0
        %1442 = vmatprep.subr.bf16.mxu0 0
        %1443 = vmatpush1.bf16.xpose.msra.mxu0 0
        %1444 = vmatprep.subr.bf16.mxu0 0
        %1445 = vmatpush1.bf16.xpose.msra.mxu0 %v1428
        %1446 = vmatprep.subr.bf16.mxu0 0
        %1447 = vmatpush2.bf16.xpose.msra.mxu0 0
        %1448 = vmatprep.subr.bf16.mxu0 0
        %1449 = vmatpush2.bf16.xpose.msra.mxu0 0
        %1450 = vmatprep.subr.bf16.mxu0 0
        %1451 = vmatpush2.bf16.xpose.msra.mxu0 0
        %1452 = vmatprep.subr.bf16.mxu0 0
        %1453 = vmatpush2.bf16.xpose.msra.mxu0 0
        %1454 = vmatprep.subr.bf16.mxu0 0
        %1455 = vmatpush2.bf16.xpose.msra.mxu0 0
        %1456 = vmatprep.subr.bf16.mxu0 0
        %1457 = vmatpush2.bf16.xpose.msra.mxu0 0
        %1458 = vmatprep.subr.bf16.mxu0 0
        %1459 = vmatpush2.bf16.xpose.msra.mxu0 0
        %1460 = vmatprep.subr.bf16.mxu0 0
        %1461 = vmatpush2.bf16.xpose.msra.mxu0 0
        %1462 = vmatprep.mubr.bf16.mxu0 0
        %1463 = vmatmul.mubr.bf16.gmra.mxu0 %v1425
        %v1464 = vpop.f32.mrf.mxu0
        %v1465 = vadd.f32 0.0, %v1464
        %v1466 = vpop.f32.mrf.mxu0
        %v1467 = vpop.f32.mrf.mxu0
        %v1468 = vpop.f32.mrf.mxu0
        %1469 = vdwg.mxu0
        %v1471 = vsel %vm1331, %v1030, 0
        %v1474 = vsel %vm1331, %v1180, 0
        %1476 = vmatprep.subr.bf16.mxu0 0
        %1477 = vmatpush1.bf16.xpose.msra.mxu0 0
        %1478 = vmatprep.subr.bf16.mxu0 0
        %1479 = vmatpush1.bf16.xpose.msra.mxu0 0
        %1480 = vmatprep.subr.bf16.mxu0 0
        %1481 = vmatpush1.bf16.xpose.msra.mxu0 0
        %1482 = vmatprep.subr.bf16.mxu0 0
        %1483 = vmatpush1.bf16.xpose.msra.mxu0 0
        %1484 = vmatprep.subr.bf16.mxu0 0
        %1485 = vmatpush1.bf16.xpose.msra.mxu0 0
        %1486 = vmatprep.subr.bf16.mxu0 0
        %1487 = vmatpush1.bf16.xpose.msra.mxu0 0
        %1488 = vmatprep.subr.bf16.mxu0 0
        %1489 = vmatpush1.bf16.xpose.msra.mxu0 0
        %1490 = vmatprep.subr.bf16.mxu0 0
        %1491 = vmatpush1.bf16.xpose.msra.mxu0 %v1474
        %1492 = vmatprep.subr.bf16.mxu0 0
        %1493 = vmatpush2.bf16.xpose.msra.mxu0 0
        %1494 = vmatprep.subr.bf16.mxu0 0
        %1495 = vmatpush2.bf16.xpose.msra.mxu0 0
        %1496 = vmatprep.subr.bf16.mxu0 0
        %1497 = vmatpush2.bf16.xpose.msra.mxu0 0
        %1498 = vmatprep.subr.bf16.mxu0 0
        %1499 = vmatpush2.bf16.xpose.msra.mxu0 0
        %1500 = vmatprep.subr.bf16.mxu0 0
        %1501 = vmatpush2.bf16.xpose.msra.mxu0 0
        %1502 = vmatprep.subr.bf16.mxu0 0
        %1503 = vmatpush2.bf16.xpose.msra.mxu0 0
        %1504 = vmatprep.subr.bf16.mxu0 0
        %1505 = vmatpush2.bf16.xpose.msra.mxu0 0
        %1506 = vmatprep.subr.bf16.mxu0 0
        %1507 = vmatpush2.bf16.xpose.msra.mxu0 0
        %1508 = vmatprep.mubr.bf16.mxu0 0
        %1509 = vmatmul.mubr.bf16.gmra.mxu0 %v1471
        %v1510 = vpop.f32.mrf.mxu0
        %v1511 = vadd.f32 0.0, %v1510
        %v1512 = vpop.f32.mrf.mxu0
        %v1513 = vpop.f32.mrf.mxu0
        %v1514 = vpop.f32.mrf.mxu0
        %1515 = vdwg.mxu0
        %v1516 = vmul.f32 %v1373, 0.35355338
        %v1517 = vmul.f32 %v1419, 0.35355338
        %v1518 = vmul.f32 %v1465, 0.35355338
        %v1519 = vmul.f32 %v1511, 0.35355338
        %v1520 = vadd.f32 %v1516, %v687
        %v1521 = vadd.f32 %v1517, %v687
        %v1522 = vadd.f32 %v1518, %v687
        %v1523 = vadd.f32 %v1519, %v687
        %v1524 = vsel %vm1331, %v1520, -inf
        %1525 = vmax.xlane.f32.xlu0 %v1524
        %v1526 = vpop.xlane.xlu0 %1525
        %v1527 = vsel %vm1331, %v1521, -inf
        %1528 = vmax.xlane.f32.xlu0 %v1527
        %v1529 = vpop.xlane.xlu0 %1528
        %v1530 = vsel %vm1331, %v1522, -inf
        %1531 = vmax.xlane.f32.xlu0 %v1530
        %v1532 = vpop.xlane.xlu0 %1531
        %v1533 = vsel %vm1331, %v1523, -inf
        %1534 = vmax.xlane.f32.xlu0 %v1533
        %v1535 = vpop.xlane.xlu0 %1534
        %v1536 = vsub.f32 %v1520, %v1526
        %v1537 = vsub.f32 %v1521, %v1529
        %v1538 = vsub.f32 %v1522, %v1532
        %v1539 = vsub.f32 %v1523, %v1535
        %v1540 = vmul.f32 %v1536, 1.442695
        %v1541 = vpow.pop %v1540
        %v1542 = vmul.f32 %v1537, 1.442695
        %v1543 = vpow.pop %v1542
        %v1544 = vmul.f32 %v1538, 1.442695
        %v1545 = vpow.pop %v1544
        %v1546 = vmul.f32 %v1539, 1.442695
        %v1547 = vpow.pop %v1546
        %v1548 = vsel %vm1331, %v1541, 0.0
        %1549 = vadd.xlane.f32.xlu0 %v1548
        %v1550 = vpop.xlane.xlu0 %1549
        %v1551 = vsel %vm1331, %v1543, 0.0
        %1552 = vadd.xlane.f32.xlu0 %v1551
        %v1553 = vpop.xlane.xlu0 %1552
        %v1554 = vsel %vm1331, %v1545, 0.0
        %1555 = vadd.xlane.f32.xlu0 %v1554
        %v1556 = vpop.xlane.xlu0 %1555
        %v1557 = vsel %vm1331, %v1547, 0.0
        %1558 = vadd.xlane.f32.xlu0 %v1557
        %v1559 = vpop.xlane.xlu0 %1558
        %v1560 = vpack.c.bf16 %v1541, %v1541
        %v1561 = vpack.c.bf16 %v1543, %v1543
        %v1562 = vpack.c.bf16 %v1545, %v1545
        %v1563 = vpack.c.bf16 %v1547, %v1547
        %v1565 = vsel %vm1331, %v1560, 0
        %vm1567 = vcmask 1043456
        %v1569 = vsel %vm1567, %v1327, 0
        %1571 = vmatprep.subr.bf16.mxu0 0
        %1572 = vmatpush1.bf16.msra.mxu0 0
        %1573 = vmatprep.subr.bf16.mxu0 0
        %1574 = vmatpush1.bf16.msra.mxu0 0
        %1575 = vmatprep.subr.bf16.mxu0 0
        %1576 = vmatpush1.bf16.msra.mxu0 0
        %1577 = vmatprep.subr.bf16.mxu0 0
        %1578 = vmatpush1.bf16.msra.mxu0 0
        %1579 = vmatprep.subr.bf16.mxu0 0
        %1580 = vmatpush1.bf16.msra.mxu0 0
        %1581 = vmatprep.subr.bf16.mxu0 0
        %1582 = vmatpush1.bf16.msra.mxu0 0
        %1583 = vmatprep.subr.bf16.mxu0 0
        %1584 = vmatpush1.bf16.msra.mxu0 0
        %1585 = vmatprep.subr.bf16.mxu0 0
        %1586 = vmatpush1.bf16.msra.mxu0 %v1569
        %1587 = vmatprep.subr.bf16.mxu0 0
        %1588 = vmatpush2.bf16.msra.mxu0 0
        %1589 = vmatprep.subr.bf16.mxu0 0
        %1590 = vmatpush2.bf16.msra.mxu0 0
        %1591 = vmatprep.subr.bf16.mxu0 0
        %1592 = vmatpush2.bf16.msra.mxu0 0
        %1593 = vmatprep.subr.bf16.mxu0 0
        %1594 = vmatpush2.bf16.msra.mxu0 0
        %1595 = vmatprep.subr.bf16.mxu0 0
        %1596 = vmatpush2.bf16.msra.mxu0 0
        %1597 = vmatprep.subr.bf16.mxu0 0
        %1598 = vmatpush2.bf16.msra.mxu0 0
        %1599 = vmatprep.subr.bf16.mxu0 0
        %1600 = vmatpush2.bf16.msra.mxu0 0
        %1601 = vmatprep.subr.bf16.mxu0 0
        %1602 = vmatpush2.bf16.msra.mxu0 0
        %1603 = vmatprep.mubr.bf16.mxu0 0
        %1604 = vmatmul.mubr.bf16.gmra.mxu0 %v1565
        %v1605 = vpop.f32.mrf.mxu0
        %v1606 = vadd.f32 0.0, %v1605
        %v1607 = vpop.f32.mrf.mxu0
        %v1608 = vpop.f32.mrf.mxu0
        %v1609 = vpop.f32.mrf.mxu0
        %1610 = vdwg.mxu0
        %v1612 = vsel %vm1331, %v1561, 0
        %v1615 = vsel %vm1567, %v1328, 0
        %1617 = vmatprep.subr.bf16.mxu0 0
        %1618 = vmatpush1.bf16.msra.mxu0 0
        %1619 = vmatprep.subr.bf16.mxu0 0
        %1620 = vmatpush1.bf16.msra.mxu0 0
        %1621 = vmatprep.subr.bf16.mxu0 0
        %1622 = vmatpush1.bf16.msra.mxu0 0
        %1623 = vmatprep.subr.bf16.mxu0 0
        %1624 = vmatpush1.bf16.msra.mxu0 0
        %1625 = vmatprep.subr.bf16.mxu0 0
        %1626 = vmatpush1.bf16.msra.mxu0 0
        %1627 = vmatprep.subr.bf16.mxu0 0
        %1628 = vmatpush1.bf16.msra.mxu0 0
        %1629 = vmatprep.subr.bf16.mxu0 0
        %1630 = vmatpush1.bf16.msra.mxu0 0
        %1631 = vmatprep.subr.bf16.mxu0 0
        %1632 = vmatpush1.bf16.msra.mxu0 %v1615
        %1633 = vmatprep.subr.bf16.mxu0 0
        %1634 = vmatpush2.bf16.msra.mxu0 0
        %1635 = vmatprep.subr.bf16.mxu0 0
        %1636 = vmatpush2.bf16.msra.mxu0 0
        %1637 = vmatprep.subr.bf16.mxu0 0
        %1638 = vmatpush2.bf16.msra.mxu0 0
        %1639 = vmatprep.subr.bf16.mxu0 0
        %1640 = vmatpush2.bf16.msra.mxu0 0
        %1641 = vmatprep.subr.bf16.mxu0 0
        %1642 = vmatpush2.bf16.msra.mxu0 0
        %1643 = vmatprep.subr.bf16.mxu0 0
        %1644 = vmatpush2.bf16.msra.mxu0 0
        %1645 = vmatprep.subr.bf16.mxu0 0
        %1646 = vmatpush2.bf16.msra.mxu0 0
        %1647 = vmatprep.subr.bf16.mxu0 0
        %1648 = vmatpush2.bf16.msra.mxu0 0
        %1649 = vmatprep.mubr.bf16.mxu0 0
        %1650 = vmatmul.mubr.bf16.gmra.mxu0 %v1612
        %v1651 = vpop.f32.mrf.mxu0
        %v1652 = vadd.f32 0.0, %v1651
        %v1653 = vpop.f32.mrf.mxu0
        %v1654 = vpop.f32.mrf.mxu0
        %v1655 = vpop.f32.mrf.mxu0
        %1656 = vdwg.mxu0
        %v1658 = vsel %vm1331, %v1562, 0
        %v1661 = vsel %vm1567, %v1329, 0
        %1663 = vmatprep.subr.bf16.mxu0 0
        %1664 = vmatpush1.bf16.msra.mxu0 0
        %1665 = vmatprep.subr.bf16.mxu0 0
        %1666 = vmatpush1.bf16.msra.mxu0 0
        %1667 = vmatprep.subr.bf16.mxu0 0
        %1668 = vmatpush1.bf16.msra.mxu0 0
        %1669 = vmatprep.subr.bf16.mxu0 0
        %1670 = vmatpush1.bf16.msra.mxu0 0
        %1671 = vmatprep.subr.bf16.mxu0 0
        %1672 = vmatpush1.bf16.msra.mxu0 0
        %1673 = vmatprep.subr.bf16.mxu0 0
        %1674 = vmatpush1.bf16.msra.mxu0 0
        %1675 = vmatprep.subr.bf16.mxu0 0
        %1676 = vmatpush1.bf16.msra.mxu0 0
        %1677 = vmatprep.subr.bf16.mxu0 0
        %1678 = vmatpush1.bf16.msra.mxu0 %v1661
        %1679 = vmatprep.subr.bf16.mxu0 0
        %1680 = vmatpush2.bf16.msra.mxu0 0
        %1681 = vmatprep.subr.bf16.mxu0 0
        %1682 = vmatpush2.bf16.msra.mxu0 0
        %1683 = vmatprep.subr.bf16.mxu0 0
        %1684 = vmatpush2.bf16.msra.mxu0 0
        %1685 = vmatprep.subr.bf16.mxu0 0
        %1686 = vmatpush2.bf16.msra.mxu0 0
        %1687 = vmatprep.subr.bf16.mxu0 0
        %1688 = vmatpush2.bf16.msra.mxu0 0
        %1689 = vmatprep.subr.bf16.mxu0 0
        %1690 = vmatpush2.bf16.msra.mxu0 0
        %1691 = vmatprep.subr.bf16.mxu0 0
        %1692 = vmatpush2.bf16.msra.mxu0 0
        %1693 = vmatprep.subr.bf16.mxu0 0
        %1694 = vmatpush2.bf16.msra.mxu0 0
        %1695 = vmatprep.mubr.bf16.mxu0 0
        %1696 = vmatmul.mubr.bf16.gmra.mxu0 %v1658
        %v1697 = vpop.f32.mrf.mxu0
        %v1698 = vadd.f32 0.0, %v1697
        %v1699 = vpop.f32.mrf.mxu0
        %v1700 = vpop.f32.mrf.mxu0
        %v1701 = vpop.f32.mrf.mxu0
        %1702 = vdwg.mxu0
        %v1704 = vsel %vm1331, %v1563, 0
        %v1707 = vsel %vm1567, %v1330, 0
        %1709 = vmatprep.subr.bf16.mxu0 0
        %1710 = vmatpush1.bf16.msra.mxu0 0
        %1711 = vmatprep.subr.bf16.mxu0 0
        %1712 = vmatpush1.bf16.msra.mxu0 0
        %1713 = vmatprep.subr.bf16.mxu0 0
        %1714 = vmatpush1.bf16.msra.mxu0 0
        %1715 = vmatprep.subr.bf16.mxu0 0
        %1716 = vmatpush1.bf16.msra.mxu0 0
        %1717 = vmatprep.subr.bf16.mxu0 0
        %1718 = vmatpush1.bf16.msra.mxu0 0
        %1719 = vmatprep.subr.bf16.mxu0 0
        %1720 = vmatpush1.bf16.msra.mxu0 0
        %1721 = vmatprep.subr.bf16.mxu0 0
        %1722 = vmatpush1.bf16.msra.mxu0 0
        %1723 = vmatprep.subr.bf16.mxu0 0
        %1724 = vmatpush1.bf16.msra.mxu0 %v1707
        %1725 = vmatprep.subr.bf16.mxu0 0
        %1726 = vmatpush2.bf16.msra.mxu0 0
        %1727 = vmatprep.subr.bf16.mxu0 0
        %1728 = vmatpush2.bf16.msra.mxu0 0
        %1729 = vmatprep.subr.bf16.mxu0 0
        %1730 = vmatpush2.bf16.msra.mxu0 0
        %1731 = vmatprep.subr.bf16.mxu0 0
        %1732 = vmatpush2.bf16.msra.mxu0 0
        %1733 = vmatprep.subr.bf16.mxu0 0
        %1734 = vmatpush2.bf16.msra.mxu0 0
        %1735 = vmatprep.subr.bf16.mxu0 0
        %1736 = vmatpush2.bf16.msra.mxu0 0
        %1737 = vmatprep.subr.bf16.mxu0 0
        %1738 = vmatpush2.bf16.msra.mxu0 0
        %1739 = vmatprep.subr.bf16.mxu0 0
        %1740 = vmatpush2.bf16.msra.mxu0 0
        %1741 = vmatprep.mubr.bf16.mxu0 0
        %1742 = vmatmul.mubr.bf16.gmra.mxu0 %v1704
        %v1743 = vpop.f32.mrf.mxu0
        %v1744 = vadd.f32 0.0, %v1743
        %v1745 = vpop.f32.mrf.mxu0
        %v1746 = vpop.f32.mrf.mxu0
        %v1747 = vpop.f32.mrf.mxu0
        %1748 = vdwg.mxu0
        %v1749 = vrcp.pop %v1550
        %v1750 = vrcp.pop %v1553
        %v1751 = vrcp.pop %v1556
        %v1752 = vrcp.pop %v1559
        %v1753 = vmul.f32 %v1606, %v1749
        %v1754 = vmul.f32 %v1652, %v1750
        %v1755 = vmul.f32 %v1698, %v1751
        %v1756 = vmul.f32 %v1744, %v1752
        %v1757 = vcombine.low %v1753, %v1755
        %v1758 = vcombine.high %v1753, %v1755
        %v1760 = vunpack.c.l.s4 1983009808
        %v1761 = vunpack.c.0.s8 %v1760
        %v1762 = vlaneseq
        %v1763 = vshrl.u32 %v1762, 7
        %v1764 = vsub.s32 %v1761, %v1763
        %v1765 = vrot.slane %v1757, %v1764
        %v1767 = vunpack.c.l.s4 1983009808
        %v1768 = vunpack.c.0.s8 %v1767
        %v1769 = vlaneseq
        %v1770 = vshrl.u32 %v1769, 7
        %v1771 = vsub.s32 %v1768, %v1770
        %v1772 = vrot.slane %v1758, %v1771
        %v1773 = vcombine.low %v1754, %v1756
        %v1774 = vcombine.high %v1754, %v1756
        %v1776 = vunpack.c.l.s4 1983009808
        %v1777 = vunpack.c.0.s8 %v1776
        %v1778 = vlaneseq
        %v1779 = vshrl.u32 %v1778, 7
        %v1780 = vsub.s32 %v1777, %v1779
        %v1781 = vrot.slane %v1773, %v1780
        %v1783 = vunpack.c.l.s4 1983009808
        %v1784 = vunpack.c.0.s8 %v1783
        %v1785 = vlaneseq
        %v1786 = vshrl.u32 %v1785, 7
        %v1787 = vsub.s32 %v1784, %v1786
        %v1788 = vrot.slane %v1774, %v1787
        %v1789 = vcombine.low %v1765, %v1781
        %v1790 = vcombine.high %v1765, %v1781
        %v1792 = vunpack.c.l.s4 1934713408
        %v1793 = vunpack.c.0.s8 %v1792
        %v1794 = vlaneseq
        %v1795 = vshrl.u32 %v1794, 7
        %v1796 = vsub.s32 %v1793, %v1795
        %v1797 = vrot.slane %v1789, %v1796
        %v1799 = vunpack.c.l.s4 1934713408
        %v1800 = vunpack.c.0.s8 %v1799
        %v1801 = vlaneseq
        %v1802 = vshrl.u32 %v1801, 7
        %v1803 = vsub.s32 %v1800, %v1802
        %v1804 = vrot.slane %v1790, %v1803
        %v1805 = vcombine.low %v1772, %v1788
        %v1806 = vcombine.high %v1772, %v1788
        %v1808 = vunpack.c.l.s4 1934713408
        %v1809 = vunpack.c.0.s8 %v1808
        %v1810 = vlaneseq
        %v1811 = vshrl.u32 %v1810, 7
        %v1812 = vsub.s32 %v1809, %v1811
        %v1813 = vrot.slane %v1805, %v1812
        %v1815 = vunpack.c.l.s4 1934713408
        %v1816 = vunpack.c.0.s8 %v1815
        %v1817 = vlaneseq
        %v1818 = vshrl.u32 %v1817, 7
        %v1819 = vsub.s32 %v1816, %v1818
        %v1820 = vrot.slane %v1806, %v1819
        %v1821 = vcombine.high %v1797, 0.0
        %v1822 = vcombine.high %v1804, 0.0
        %v1823 = vcombine.high %v1813, 0.0
        %v1824 = vcombine.high %v1820, 0.0
        %v1825 = vcombine.low %v1797, %v1804
        %v1827 = vunpack.c.l.s4 1983009808
        %v1828 = vunpack.c.0.s8 %v1827
        %v1829 = vlaneseq
        %v1830 = vshrl.u32 %v1829, 7
        %v1831 = vsub.s32 %v1828, %v1830
        %v1832 = vrot.slane %v1825, %v1831
        %v1833 = vcombine.low %v1821, %v1822
        %v1835 = vunpack.c.l.s4 1983009808
        %v1836 = vunpack.c.0.s8 %v1835
        %v1837 = vlaneseq
        %v1838 = vshrl.u32 %v1837, 7
        %v1839 = vsub.s32 %v1836, %v1838
        %v1840 = vrot.slane %v1833, %v1839
        %v1841 = vcombine.low %v1813, %v1820
        %v1843 = vunpack.c.l.s4 1983009808
        %v1844 = vunpack.c.0.s8 %v1843
        %v1845 = vlaneseq
        %v1846 = vshrl.u32 %v1845, 7
        %v1847 = vsub.s32 %v1844, %v1846
        %v1848 = vrot.slane %v1841, %v1847
        %v1849 = vcombine.low %v1823, %v1824
        %v1851 = vunpack.c.l.s4 1983009808
        %v1852 = vunpack.c.0.s8 %v1851
        %v1853 = vlaneseq
        %v1854 = vshrl.u32 %v1853, 7
        %v1855 = vsub.s32 %v1852, %v1854
        %v1856 = vrot.slane %v1849, %v1855
        %v1857 = vcombine.low %v1832, %v1840
        %v1858 = vcombine.high %v1832, %v1840
        %v1860 = vunpack.c.l.s4 1934713408
        %v1861 = vunpack.c.0.s8 %v1860
        %v1862 = vlaneseq
        %v1863 = vshrl.u32 %v1862, 7
        %v1864 = vsub.s32 %v1861, %v1863
        %v1865 = vrot.slane %v1857, %v1864
        %v1867 = vunpack.c.l.s4 1934713408
        %v1868 = vunpack.c.0.s8 %v1867
        %v1869 = vlaneseq
        %v1870 = vshrl.u32 %v1869, 7
        %v1871 = vsub.s32 %v1868, %v1870
        %v1872 = vrot.slane %v1858, %v1871
        %v1873 = vcombine.low %v1848, %v1856
        %v1874 = vcombine.high %v1848, %v1856
        %v1876 = vunpack.c.l.s4 1934713408
        %v1877 = vunpack.c.0.s8 %v1876
        %v1878 = vlaneseq
        %v1879 = vshrl.u32 %v1878, 7
        %v1880 = vsub.s32 %v1877, %v1879
        %v1881 = vrot.slane %v1873, %v1880
        %v1883 = vunpack.c.l.s4 1934713408
        %v1884 = vunpack.c.0.s8 %v1883
        %v1885 = vlaneseq
        %v1886 = vshrl.u32 %v1885, 7
        %v1887 = vsub.s32 %v1884, %v1886
        %v1888 = vrot.slane %v1874, %v1887
        %v1889 = vcombine.low %v1865, %v1881
        %v1890 = vcombine.high %v1865, %v1881
        %v1891 = vcombine.low %v1872, %v1888
        %v1892 = vcombine.high %v1872, %v1888
        %1894 = vrot.lane.b32.xlu0 %v1890, 8
        %v1895 = vpop.permute.xlu0 %1894
        %1898 = vrot.lane.b32.xlu0 %v1891, 16
        %v1899 = vpop.permute.xlu0 %1898
        %1902 = vrot.lane.b32.xlu0 %v1892, 24
        %v1903 = vpop.permute.xlu0 %1902
        %v1905 = vsel %vm1331, %v1889, %v1895
        %vm1906 = vcmask 130048
        %v1907 = vsel %vm1906, %v1905, %v1899
        %vm1908 = vcmask 195584
        %v1909 = vsel %vm1908, %v1907, %v1903
        %v1910 = vpack.c.bf16 %v1909, %v1909
        %v1911 = vld [vmem:[#allocation11] sm:$0xf]
        %v1912 = vld [vmem:[#allocation11 + $0x4] sm:$0xf]
        %v1913 = vld [vmem:[#allocation11 + $0x8] sm:$0xf]
        %v1914 = vld [vmem:[#allocation11 + $0xc] sm:$0xf]
        %v1915 = vld [vmem:[#allocation13] sm:$0x1]
        %v1917 = vlaneseq
        %v1918 = vshrl.u32 %v1917, 7
        %v1919 = vsub.s32 0, %v1918
        %v1920 = vrot.slane %v1915, %v1919
        %v1926 = vunpack.c.l.b16 %v1911
        %v1927 = vunpack.c.l.b16 %v1912
        %v1928 = vunpack.c.l.b16 %v1913
        %v1929 = vunpack.c.l.b16 %v1914
        %v1930 = vpack.c.b16 %v1927, %v1926
        %v1931 = vpack.c.b16 %v1929, %v1928
        %v1935 = vsel %vm711, %v1910, 0
        %1937 = vmatprep.subr.bf16.mxu0 0
        %1938 = vmatpush1.bf16.msra.mxu0 0
        %1939 = vmatprep.subr.bf16.mxu0 0
        %1940 = vmatpush1.bf16.msra.mxu0 0
        %1941 = vmatprep.subr.bf16.mxu0 0
        %1942 = vmatpush1.bf16.msra.mxu0 0
        %1943 = vmatprep.subr.bf16.mxu0 0
        %1944 = vmatpush1.bf16.msra.mxu0 0
        %1945 = vmatprep.subr.bf16.mxu0 0
        %1946 = vmatpush1.bf16.msra.mxu0 0
        %1947 = vmatprep.subr.bf16.mxu0 0
        %1948 = vmatpush1.bf16.msra.mxu0 0
        %1949 = vmatprep.subr.bf16.mxu0 0
        %1950 = vmatpush1.bf16.msra.mxu0 %v1931
        %1951 = vmatprep.subr.bf16.mxu0 0
        %1952 = vmatpush1.bf16.msra.mxu0 %v1930
        %1953 = vmatprep.subr.bf16.mxu0 0
        %1954 = vmatpush2.bf16.msra.mxu0 0
        %1955 = vmatprep.subr.bf16.mxu0 0
        %1956 = vmatpush2.bf16.msra.mxu0 0
        %1957 = vmatprep.subr.bf16.mxu0 0
        %1958 = vmatpush2.bf16.msra.mxu0 0
        %1959 = vmatprep.subr.bf16.mxu0 0
        %1960 = vmatpush2.bf16.msra.mxu0 0
        %1961 = vmatprep.subr.bf16.mxu0 0
        %1962 = vmatpush2.bf16.msra.mxu0 0
        %1963 = vmatprep.subr.bf16.mxu0 0
        %1964 = vmatpush2.bf16.msra.mxu0 0
        %1965 = vmatprep.subr.bf16.mxu0 0
        %1966 = vmatpush2.bf16.msra.mxu0 0
        %1967 = vmatprep.subr.bf16.mxu0 0
        %1968 = vmatpush2.bf16.msra.mxu0 0
        %1969 = vmatprep.mubr.bf16.mxu0 0
        %1970 = vmatmul.mubr.bf16.gmra.mxu0 %v1935
        %v1971 = vpop.f32.mrf.mxu0
        %v1972 = vadd.f32 %v1920, %v1971
        %v1973 = vpop.f32.mrf.mxu0
        %v1974 = vpop.f32.mrf.mxu0
        %v1975 = vpop.f32.mrf.mxu0
        %1976 = vdwg.mxu0
        %v1977 = vadd.f32 %v1972, %v683
        %v1978 = vsel %vm711, %v1977, 0.0
        %1979 = vadd.xlane.f32.xlu0 %v1978
        %v1980 = vpop.xlane.xlu0 %1979
        %v1981 = vrcp.pop 32.0
        %v1982 = vmul.f32 %v1980, %v1981
        %v1983 = vsub.f32 %v1977, %v1982
        %v1984 = vmul.f32 %v1983, %v1983
        %v1985 = vsel %vm711, %v1984, 0.0
        %1986 = vadd.xlane.f32.xlu0 %v1985
        %v1987 = vpop.xlane.xlu0 %1986
        %v1988 = vmul.f32 %v1987, %v1981
        %v1989 = vadd.f32 %v1988, 1e-12
        %v1990 = vrsqrt.pop %v1989
        %v1991 = vmul.f32 %v1983, %v1990
        %v1992 = vld [vmem:[%s10] sm:$0x1]
        %v1994 = vlaneseq
        %v1995 = vshrl.u32 %v1994, 7
        %v1996 = vsub.s32 0, %v1995
        %v1997 = vrot.slane %v1992, %v1996
        %v1999 = vmul.f32 %v1991, %v1997
        %v2000 = vld [vmem:[%s11] sm:$0x1]
        %v2002 = vlaneseq
        %v2003 = vshrl.u32 %v2002, 7
        %v2004 = vsub.s32 0, %v2003
        %v2005 = vrot.slane %v2000, %v2004
        %v2007 = vadd.f32 %v1999, %v2005
        %v2008 = vpack.c.bf16 %v2007, %v2007
        %v2009 = vld [vmem:[%s12] sm:$0xf]
        %v2010 = vld [vmem:[%s12 + $0x4] sm:$0xf]
        %v2011 = vld [vmem:[%s12 + $0x8] sm:$0xf]
        %v2012 = vld [vmem:[%s12 + $0xc] sm:$0xf]
        %v2013 = vld [vmem:[%s13] sm:$0x1]
        %v2015 = vlaneseq
        %v2016 = vshrl.u32 %v2015, 7
        %v2017 = vsub.s32 0, %v2016
        %v2018 = vrot.slane %v2013, %v2017
        %v2024 = vunpack.c.l.b16 %v2009
        %v2025 = vunpack.c.l.b16 %v2010
        %v2026 = vunpack.c.l.b16 %v2011
        %v2027 = vunpack.c.l.b16 %v2012
        %v2028 = vpack.c.b16 %v2025, %v2024
        %v2029 = vpack.c.b16 %v2027, %v2026
        %v2033 = vsel %vm711, %v2008, 0
        %2035 = vmatprep.subr.bf16.mxu0 0
        %2036 = vmatpush1.bf16.msra.mxu0 0
        %2037 = vmatprep.subr.bf16.mxu0 0
        %2038 = vmatpush1.bf16.msra.mxu0 0
        %2039 = vmatprep.subr.bf16.mxu0 0
        %2040 = vmatpush1.bf16.msra.mxu0 0
        %2041 = vmatprep.subr.bf16.mxu0 0
        %2042 = vmatpush1.bf16.msra.mxu0 0
        %2043 = vmatprep.subr.bf16.mxu0 0
        %2044 = vmatpush1.bf16.msra.mxu0 0
        %2045 = vmatprep.subr.bf16.mxu0 0
        %2046 = vmatpush1.bf16.msra.mxu0 0
        %2047 = vmatprep.subr.bf16.mxu0 0
        %2048 = vmatpush1.bf16.msra.mxu0 %v2029
        %2049 = vmatprep.subr.bf16.mxu0 0
        %2050 = vmatpush1.bf16.msra.mxu0 %v2028
        %2051 = vmatprep.subr.bf16.mxu0 0
        %2052 = vmatpush2.bf16.msra.mxu0 0
        %2053 = vmatprep.subr.bf16.mxu0 0
        %2054 = vmatpush2.bf16.msra.mxu0 0
        %2055 = vmatprep.subr.bf16.mxu0 0
        %2056 = vmatpush2.bf16.msra.mxu0 0
        %2057 = vmatprep.subr.bf16.mxu0 0
        %2058 = vmatpush2.bf16.msra.mxu0 0
        %2059 = vmatprep.subr.bf16.mxu0 0
        %2060 = vmatpush2.bf16.msra.mxu0 0
        %2061 = vmatprep.subr.bf16.mxu0 0
        %2062 = vmatpush2.bf16.msra.mxu0 0
        %2063 = vmatprep.subr.bf16.mxu0 0
        %2064 = vmatpush2.bf16.msra.mxu0 0
        %2065 = vmatprep.subr.bf16.mxu0 0
        %2066 = vmatpush2.bf16.msra.mxu0 0
        %2067 = vmatprep.mubr.bf16.mxu0 0
        %2068 = vmatmul.mubr.bf16.gmra.mxu0 %v2033
        %v2069 = vpop.f32.mrf.mxu0
        %v2070 = vadd.f32 %v2018, %v2069
        %v2071 = vpop.f32.mrf.mxu0
        %v2072 = vpop.f32.mrf.mxu0
        %v2073 = vpop.f32.mrf.mxu0
        %2074 = vdwg.mxu0
        %v2075 = vmax.f32 %v2070, 0.0
        %v2076 = vpack.c.bf16 %v2075, %v2075
        %v2077 = vld [vmem:[%s14] sm:$0xf]
        %v2078 = vld [vmem:[%s14 + $0x4] sm:$0xf]
        %v2079 = vld [vmem:[%s14 + $0x8] sm:$0xf]
        %v2080 = vld [vmem:[%s14 + $0xc] sm:$0xf]
        %v2081 = vld [vmem:[%s14 + $0x10] sm:$0xf]
        %v2082 = vld [vmem:[%s14 + $0x14] sm:$0xf]
        %v2083 = vld [vmem:[%s14 + $0x18] sm:$0xf]
        %v2084 = vld [vmem:[%s14 + $0x1c] sm:$0xf]
        %v2085 = vld [vmem:[%s15] sm:$0x1]
        %v2087 = vlaneseq
        %v2088 = vshrl.u32 %v2087, 7
        %v2089 = vsub.s32 0, %v2088
        %v2090 = vrot.slane %v2085, %v2089
        %v2100 = vunpack.c.l.b16 %v2077
        %v2101 = vunpack.c.l.b16 %v2078
        %v2102 = vunpack.c.l.b16 %v2079
        %v2103 = vunpack.c.l.b16 %v2080
        %v2104 = vunpack.c.l.b16 %v2081
        %v2105 = vunpack.c.l.b16 %v2082
        %v2106 = vunpack.c.l.b16 %v2083
        %v2107 = vunpack.c.l.b16 %v2084
        %v2108 = vpack.c.b16 %v2101, %v2100
        %v2109 = vpack.c.b16 %v2103, %v2102
        %v2110 = vpack.c.b16 %v2105, %v2104
        %v2111 = vpack.c.b16 %v2107, %v2106
        %vm2116 = vcmask 523264
        %v2118 = vsel %vm2116, %v2076, 0
        %2120 = vmatprep.subr.bf16.mxu0 0
        %2121 = vmatpush1.bf16.msra.mxu0 0
        %2122 = vmatprep.subr.bf16.mxu0 0
        %2123 = vmatpush1.bf16.msra.mxu0 0
        %2124 = vmatprep.subr.bf16.mxu0 0
        %2125 = vmatpush1.bf16.msra.mxu0 0
        %2126 = vmatprep.subr.bf16.mxu0 0
        %2127 = vmatpush1.bf16.msra.mxu0 0
        %2128 = vmatprep.subr.bf16.mxu0 0
        %2129 = vmatpush1.bf16.msra.mxu0 %v2111
        %2130 = vmatprep.subr.bf16.mxu0 0
        %2131 = vmatpush1.bf16.msra.mxu0 %v2110
        %2132 = vmatprep.subr.bf16.mxu0 0
        %2133 = vmatpush1.bf16.msra.mxu0 %v2109
        %2134 = vmatprep.subr.bf16.mxu0 0
        %2135 = vmatpush1.bf16.msra.mxu0 %v2108
        %2136 = vmatprep.subr.bf16.mxu0 0
        %2137 = vmatpush2.bf16.msra.mxu0 0
        %2138 = vmatprep.subr.bf16.mxu0 0
        %2139 = vmatpush2.bf16.msra.mxu0 0
        %2140 = vmatprep.subr.bf16.mxu0 0
        %2141 = vmatpush2.bf16.msra.mxu0 0
        %2142 = vmatprep.subr.bf16.mxu0 0
        %2143 = vmatpush2.bf16.msra.mxu0 0
        %2144 = vmatprep.subr.bf16.mxu0 0
        %2145 = vmatpush2.bf16.msra.mxu0 0
        %2146 = vmatprep.subr.bf16.mxu0 0
        %2147 = vmatpush2.bf16.msra.mxu0 0
        %2148 = vmatprep.subr.bf16.mxu0 0
        %2149 = vmatpush2.bf16.msra.mxu0 0
        %2150 = vmatprep.subr.bf16.mxu0 0
        %2151 = vmatpush2.bf16.msra.mxu0 0
        %2152 = vmatprep.mubr.bf16.mxu0 0
        %2153 = vmatmul.mubr.bf16.gmra.mxu0 %v2118
        %v2154 = vpop.f32.mrf.mxu0
        %v2155 = vadd.f32 %v2090, %v2154
        %v2156 = vpop.f32.mrf.mxu0
        %v2157 = vpop.f32.mrf.mxu0
        %v2158 = vpop.f32.mrf.mxu0
        %2159 = vdwg.mxu0
        %v2160 = vadd.f32 %v2155, %v2007
        %v2161 = vsel %vm711, %v2160, 0.0
        %2162 = vadd.xlane.f32.xlu0 %v2161
        %v2163 = vpop.xlane.xlu0 %2162
        %v2164 = vmul.f32 %v2163, %v1981
        %v2165 = vsub.f32 %v2160, %v2164
        %v2166 = vmul.f32 %v2165, %v2165
        %v2167 = vsel %vm711, %v2166, 0.0
        %2168 = vadd.xlane.f32.xlu0 %v2167
        %v2169 = vpop.xlane.xlu0 %2168
        %v2170 = vmul.f32 %v2169, %v1981
        %v2171 = vadd.f32 %v2170, 1e-12
        %v2172 = vrsqrt.pop %v2171
        %v2173 = vmul.f32 %v2165, %v2172
        %v2174 = vld [vmem:[%s16] sm:$0x1]
        %v2176 = vlaneseq
        %v2177 = vshrl.u32 %v2176, 7
        %v2178 = vsub.s32 0, %v2177
        %v2179 = vrot.slane %v2174, %v2178
        %v2181 = vmul.f32 %v2173, %v2179
        %v2182 = vld [vmem:[%s17] sm:$0x1]
        %v2184 = vlaneseq
        %v2185 = vshrl.u32 %v2184, 7
        %v2186 = vsub.s32 0, %v2185
        %v2187 = vrot.slane %v2182, %v2186
        %v2189 = vadd.f32 %v2181, %v2187
        %2190 = vst.msk [vmem:[%s673] sm:$0xff] %vm711, %v2189
        %s2191 = sand.u32 %s432, 1
        %s2192 = scalar_lea.sflag [#allocation4], %s2191
        %s2193 = sand.u32 %s432, 1
        %s2194 = smul.addr %s2193, 8
        %s2195 = scalar_lea.vmem [#allocation14], %s2194
        // Predicated region
        $region121: #{tpu_custom_call.1} parent=91 // pred_check
          %p2196 = pneg %p442
        $region122: #{tpu_custom_call.1} parent=91 // pred_check_branch
          %2198 = sbr.rel (%p2196) target = $region124
        $region123: #{tpu_custom_call.1} parent=91 // pred_region
          %s2200 = ssub.s32 128, 128
          %2201 = vsyncadd %s2192, %s2200
          %s2202 = smul.addr %s36, 128
          %s2203 = scalar_lea.hbm %s18, %s2202
          %s2205 = sshll.u32 %s2195, 4
          %s2206 = int_to_ptr.vmem [resolvable:$true] %s2205
          %2208 = dma.vmem_to_hbm [thread:$0]  %s2206, 128, %s2203, %s2192
        $region124: #{tpu_custom_call.1} parent=91 // pred_fallthru
          _
      $region92: #{tpu_custom_call.1} parent=5 // pred_fallthru
        _
      %p2209 = scmp.le.s32.totalorder 2, %s31
      // Predicated region
      $region125: #{tpu_custom_call.1} parent=5 // pred_check
        %p2210 = pneg %p2209
      $region126: #{tpu_custom_call.1} parent=5 // pred_check_branch
        %2212 = sbr.rel (%p2210) target = $region128
      $region127: #{tpu_custom_call.1} parent=5 // pred_region
        %s2213 = ssub.s32 %s31, 2
        // Predicated region
        $region129: #{tpu_custom_call.1} parent=127 // pred_check
          %p2214 = pneg %p448
        $region130: #{tpu_custom_call.1} parent=127 // pred_check_branch
          %2216 = sbr.rel (%p2214) target = $region132
        $region131: #{tpu_custom_call.1} parent=127 // pred_region
          %s2217 = sand.u32 %s433, 1
          %s2218 = scalar_lea.sflag [#allocation4], %s2217
          %s2219 = sand.u32 %s433, 1
          %s2220 = smul.addr %s2219, 8
          %s2221 = scalar_lea.vmem [#allocation14], %s2220
          %2222 = dma.done %s2218, 128
        $region132: #{tpu_custom_call.1} parent=127 // pred_fallthru
          _
      $region128: #{tpu_custom_call.1} parent=5 // pred_fallthru
        _
    $region6: #{tpu_custom_call.1} parent=1 // loop_footer
      %s35 = sadd.s32 1, %s31
    $region7: #{tpu_custom_call.1} parent=1 // loop_footer_branch
      %30 = sbr.rel target = $region3
    $region8: #{tpu_custom_call.1} parent=1 // loop_exit
      _
    %2223 = vsyncpa [#allocation3], 1
    %s2224 = scalar_lea.sflag [#allocation3], 1
    %2225 = vsyncpa %s2224, 1
    %2226 = vsyncpa [#allocation6], 1
    %2227 = vsyncpa [#allocation9], 1
    %2228 = vsyncpa [#allocation12], 1
    %2229 = vsyncpa [#allocation4], 1
    %s2230 = scalar_lea.sflag [#allocation4], 1
    %2231 = vsyncpa %s2230, 1

</llo_original>
